<compile_context>
chip_gen: v6e
topology: v6e:2x2x1
jax: 0.10.0
libtpu: 0.0.40
codegen_flags: <defaults>
</compile_context>

<pallas_src>
import math
import functools

import jax
import jax.numpy as jnp
from jax.experimental import pallas as pl
from jax.experimental.pallas import tpu as pltpu


def make_encoder_layer_kernel(S, D, nhead, dff):
    hd = D // nhead
    eps = 1e-5
    bf16 = jnp.bfloat16

    def layer_norm(x, w, b):
        # single reduction pass: var = E[x^2] - mu^2 (f32; eps guards cancellation)
        mu = jnp.mean(x, axis=-1, keepdims=True)
        ms = jnp.mean(x * x, axis=-1, keepdims=True)
        var = ms - mu * mu
        return (x - mu) * jax.lax.rsqrt(var + eps) * w + b

    def kernel(src_ref, pos_ref,
               wqk_ref, bqk_ref, wv_ref, bv_ref,
               wo_ref, bo_ref, ln1w_ref, ln1b_ref,
               w1_ref, b1_ref, w2_ref, b2_ref, ln2w_ref, ln2b_ref,
               out_ref):
        src = src_ref[...]                                   # (S, D) f32, one batch elem
        pos = pos_ref[...]

        # Fused Q|K projection (Q pre-scaled via its weights); V uses src only.
        qk = jnp.dot((src + pos).astype(bf16), wqk_ref[...],
                     preferred_element_type=jnp.float32) + bqk_ref[...]     # (S, 2D)
        v = jnp.dot(src.astype(bf16), wv_ref[...],
                    preferred_element_type=jnp.float32) + bv_ref[...]       # (S, D)

        # Per-head attention.  Head concat is folded into the output
        # projection: attn += oh @ wo[h]; no scratch, only lane-dense stores.
        attn = jnp.zeros((S, D), jnp.float32)
        for h in range(nhead):                               # static, fully unrolled
            lo = h * hd
            qh = qk[:, lo:lo + hd].astype(bf16)              # (S, hd)
            kh = qk[:, D + lo:D + lo + hd].astype(bf16)      # (S, hd)
            vh = v[:, lo:lo + hd].astype(bf16)               # (S, hd)

            logits = jax.lax.dot_general(                    # q @ k^T on the MXU
                qh, kh, (((1,), (1,)), ((), ())),
                preferred_element_type=jnp.float32)          # (S, S) f32
            logits = logits - jnp.max(logits, axis=-1, keepdims=True)
            p = jnp.exp(logits)
            denom = jnp.sum(p, axis=-1, keepdims=True)
            p = p * pl.reciprocal(denom, approx=True)        # EUP slot, ~free
            oh = jnp.dot(p.astype(bf16), vh,
                         preferred_element_type=jnp.float32)                # (S, hd)
            attn = attn + jnp.dot(oh.astype(bf16), wo_ref[h],
                                  preferred_element_type=jnp.float32)       # (S, D)
        attn = attn + bo_ref[...]

        # residual + LayerNorm 1 (f32)
        x = layer_norm(src + attn, ln1w_ref[...], ln1b_ref[...])

        # FFN: Linear -> ReLU -> Linear (bf16 operands, f32 accumulation).
        h1 = jnp.dot(x.astype(bf16), w1_ref[...],
                     preferred_element_type=jnp.float32) + b1_ref[...]      # (S, dff)
        h1 = jnp.maximum(h1, 0.0).astype(bf16)               # largest intermediate -> bf16
        ff = jnp.dot(h1, w2_ref[...],
                     preferred_element_type=jnp.float32) + b2_ref[...]      # (S, D)

        # residual + LayerNorm 2 (f32)
        out_ref[...] = layer_norm(x + ff, ln2w_ref[...], ln2b_ref[...]).astype(out_ref.dtype)

    return kernel


def encoder_layer(src, pos, params, nhead):
    """src, pos: [S, B, D] float32 (seq-major, PyTorch MHA layout). Returns [S, B, D]."""
    S, B, D = src.shape
    dff = params['w1'].shape[0]
    hd = D // nhead
    scale = 1.0 / math.sqrt(hd)
    bf = jnp.bfloat16

    # TODO(synk): keep activations batch-major across the whole encoder so these
    # two full-tensor HBM transposes disappear; kept to preserve the [S,B,D]
    # module interface.
    src_b = jnp.transpose(src, (1, 0, 2)).astype(jnp.float32)   # (B, S, D)
    pos_b = jnp.transpose(pos, (1, 0, 2)).astype(jnp.float32)

    # PyTorch (out, in) weights -> (in, out); fuse Q|K and fold 1/sqrt(hd) into
    # the Q weights/bias; pre-split the out-projection per head so the kernel
    # folds the head concat into the output projection.  Matmul weights bf16,
    # biases / LN params stay f32 (added after f32 accumulation).
    wqk = jnp.concatenate([params['wq'].T * scale, params['wk'].T], axis=1).astype(bf)   # (D, 2D)
    bqk = jnp.concatenate([params['bq'] * scale, params['bk']]).reshape(1, 2 * D)
    wo_split = params['wo'].T.reshape(nhead, hd, D).astype(bf)                           # (nhead, hd, D)
    weight_args = [
        wqk, bqk,
        params['wv'].T.astype(bf), params['bv'].reshape(1, D),
        wo_split, params['bo'].reshape(1, D),
        params['ln1w'].reshape(1, D), params['ln1b'].reshape(1, D),
        params['w1'].T.astype(bf), params['b1'].reshape(1, dff),
        params['w2'].T.astype(bf), params['b2'].reshape(1, D),
        params['ln2w'].reshape(1, D), params['ln2b'].reshape(1, D),
    ]

    # Weights are grid-invariant (constant block index -> fetched once).
    def weight_spec(a):
        n = a.ndim
        return pl.BlockSpec(a.shape, lambda b, n=n: (0,) * n)

    in_specs = (
        [pl.BlockSpec((None, S, D), lambda b: (b, 0, 0)),    # src  -> kernel sees (S, D)
         pl.BlockSpec((None, S, D), lambda b: (b, 0, 0))]    # pos
        + [weight_spec(a) for a in weight_args]
    )

    kernel = make_encoder_layer_kernel(S, D, nhead, dff)
    out = pl.pallas_call(
        kernel,
        out_shape=jax.ShapeDtypeStruct((B, S, D), jnp.float32),
        grid=(B,),                                           # one image's tokens per step
        in_specs=in_specs,
        out_specs=pl.BlockSpec((None, S, D), lambda b: (b, 0, 0)),
        compiler_params=pltpu.CompilerParams(
            dimension_semantics=("parallel",),               # megacore sharding on v7x
            # Re-derive per generation: 128 MiB physical VMEM on v5e/v6e, only
            # 64 MiB on v7x; per-step working set here is far below either.
            vmem_limit_bytes=64 * 1024 * 1024,
        ),
    )(src_b, pos_b, *weight_args)

    return jnp.transpose(out, (1, 0, 2))                     # back to [S, B, D]


def init_params(key, D, nhead, dff):
    keys = jax.random.split(key, 8)
    s = 0.05
    in_proj_w = jax.random.normal(keys[0], (3 * D, D), jnp.float32) * s
    in_proj_b = jax.random.normal(keys[1], (3 * D,), jnp.float32) * s
    return dict(
        wq=in_proj_w[:D], wk=in_proj_w[D:2 * D], wv=in_proj_w[2 * D:],
        bq=in_proj_b[:D], bk=in_proj_b[D:2 * D], bv=in_proj_b[2 * D:],
        wo=jax.random.normal(keys[2], (D, D), jnp.float32) * s,
        bo=jax.random.normal(keys[3], (D,), jnp.float32) * s,
        ln1w=jnp.ones((D,), jnp.float32), ln1b=jnp.zeros((D,), jnp.float32),
        w1=jax.random.normal(keys[4], (dff, D), jnp.float32) * s,
        b1=jax.random.normal(keys[5], (dff,), jnp.float32) * s,
        w2=jax.random.normal(keys[6], (D, dff), jnp.float32) * s,
        b2=jax.random.normal(keys[7], (D,), jnp.float32) * s,
        ln2w=jnp.ones((D,), jnp.float32), ln2b=jnp.zeros((D,), jnp.float32),
    )


def ref_forward(src, pos, p, nhead):
    """Pure-JAX f32 reference matching PyTorch EncoderLayer (eval mode)."""
    S, B, D = src.shape
    hd = D // nhead
    qk = src + pos
    q = jnp.einsum('sbd,ed->sbe', qk, p['wq']) + p['bq']
    k = jnp.einsum('sbd,ed->sbe', qk, p['wk']) + p['bk']
    v = jnp.einsum('sbd,ed->sbe', src, p['wv']) + p['bv']
    qh = q.reshape(S, B, nhead, hd) / math.sqrt(hd)
    kh = k.reshape(S, B, nhead, hd)
    vh = v.reshape(S, B, nhead, hd)
    logits = jnp.einsum('sbhd,tbhd->bhst', qh, kh)
    w = jax.nn.softmax(logits, axis=-1)
    a = jnp.einsum('bhst,tbhd->sbhd', w, vh).reshape(S, B, D)
    a = jnp.einsum('sbd,ed->sbe', a, p['wo']) + p['bo']

    def ln(x, g, b):
        mu = x.mean(-1, keepdims=True)
        var = ((x - mu) ** 2).mean(-1, keepdims=True)
        return (x - mu) / jnp.sqrt(var + 1e-5) * g + b

    x = ln(src + a, p['ln1w'], p['ln1b'])
    h1 = jnp.maximum(jnp.einsum('sbd,fd->sbf', x, p['w1']) + p['b1'], 0.0)
    ff = jnp.einsum('sbf,df->sbd', h1, p['w2']) + p['b2']
    return ln(x + ff, p['ln2w'], p['ln2b'])


if __name__ == "__main__":
    # Small demo shapes: seq = H*W = 16 (4x4 feature map), batch = 2,
    # d_model = 32, nhead = 4, dim_feedforward = 64.
    # (Real DETR scale is S>=625, D=256, dff=2048 — tune tiles there.)
    S, B, D, NHEAD, DFF = 16, 2, 32, 4, 64
    key = jax.random.PRNGKey(0)
    k1, k2, k3 = jax.random.split(key, 3)
    src = jax.random.normal(k1, (S, B, D), jnp.float32)
    pos = jax.random.normal(k2, (S, B, D), jnp.float32)
    params = init_params(k3, D, NHEAD, DFF)

    run = jax.jit(functools.partial(encoder_layer, nhead=NHEAD))
    out = run(src, pos, params)
    out = jax.block_until_ready(out)

    ref = ref_forward(src, pos, params, NHEAD)
    assert out.shape == (S, B, D)
    max_err = float(jnp.max(jnp.abs(out - ref)))
    # bf16 matmul operands + approx reciprocal -> loosened tolerance vs f32 ref
    assert jnp.allclose(out, ref, atol=3e-2, rtol=3e-2), f"max abs err = {max_err}"
    print("KERNEL_OK")
</pallas_src>

<mosaic_0001>
module attributes {stable_mosaic.version = 11 : i64} {
  func.func @kernel(%arg0: i32, %arg1: memref<1x16x32xf32, #tpu.memory_space<vmem>>, %arg2: memref<1x16x32xf32, #tpu.memory_space<vmem>>, %arg3: memref<32x64xbf16, #tpu.memory_space<vmem>>, %arg4: memref<1x64xf32, #tpu.memory_space<vmem>>, %arg5: memref<32x32xbf16, #tpu.memory_space<vmem>>, %arg6: memref<1x32xf32, #tpu.memory_space<vmem>>, %arg7: memref<4x8x32xbf16, #tpu.memory_space<vmem>>, %arg8: memref<1x32xf32, #tpu.memory_space<vmem>>, %arg9: memref<1x32xf32, #tpu.memory_space<vmem>>, %arg10: memref<1x32xf32, #tpu.memory_space<vmem>>, %arg11: memref<32x64xbf16, #tpu.memory_space<vmem>>, %arg12: memref<1x64xf32, #tpu.memory_space<vmem>>, %arg13: memref<64x32xbf16, #tpu.memory_space<vmem>>, %arg14: memref<1x32xf32, #tpu.memory_space<vmem>>, %arg15: memref<1x32xf32, #tpu.memory_space<vmem>>, %arg16: memref<1x32xf32, #tpu.memory_space<vmem>>, %arg17: memref<1x16x32xf32, #tpu.memory_space<vmem>>) attributes {dimension_semantics = [#tpu.dimension_semantics<parallel>], iteration_bounds = array<i64: 2>, scalar_prefetch = 0 : i64, scratch_operands = 0 : i64, tpu.core_type = #tpu.core_type<tc>, window_params = [{transform_indices = @transform_0, window_bounds = array<i64: 1, 16, 32>}, {transform_indices = @transform_1, window_bounds = array<i64: 1, 16, 32>}, {pipeline_mode = #tpu.pipeline_mode<synchronous>, transform_indices = @transform_2, window_bounds = array<i64: 32, 64>}, {pipeline_mode = #tpu.pipeline_mode<synchronous>, transform_indices = @transform_3, window_bounds = array<i64: 1, 64>}, {pipeline_mode = #tpu.pipeline_mode<synchronous>, transform_indices = @transform_4, window_bounds = array<i64: 32, 32>}, {pipeline_mode = #tpu.pipeline_mode<synchronous>, transform_indices = @transform_5, window_bounds = array<i64: 1, 32>}, {pipeline_mode = #tpu.pipeline_mode<synchronous>, transform_indices = @transform_6, window_bounds = array<i64: 4, 8, 32>}, {pipeline_mode = #tpu.pipeline_mode<synchronous>, transform_indices = @transform_7, window_bounds = array<i64: 1, 32>}, {pipeline_mode = #tpu.pipeline_mode<synchronous>, transform_indices = @transform_8, window_bounds = array<i64: 1, 32>}, {pipeline_mode = #tpu.pipeline_mode<synchronous>, transform_indices = @transform_9, window_bounds = array<i64: 1, 32>}, {pipeline_mode = #tpu.pipeline_mode<synchronous>, transform_indices = @transform_10, window_bounds = array<i64: 32, 64>}, {pipeline_mode = #tpu.pipeline_mode<synchronous>, transform_indices = @transform_11, window_bounds = array<i64: 1, 64>}, {pipeline_mode = #tpu.pipeline_mode<synchronous>, transform_indices = @transform_12, window_bounds = array<i64: 64, 32>}, {pipeline_mode = #tpu.pipeline_mode<synchronous>, transform_indices = @transform_13, window_bounds = array<i64: 1, 32>}, {pipeline_mode = #tpu.pipeline_mode<synchronous>, transform_indices = @transform_14, window_bounds = array<i64: 1, 32>}, {pipeline_mode = #tpu.pipeline_mode<synchronous>, transform_indices = @transform_15, window_bounds = array<i64: 1, 32>}, {transform_indices = @transform_16, window_bounds = array<i64: 1, 16, 32>}]} {
    %c0 = arith.constant 0 : index
    %c0_0 = arith.constant 0 : index
    %c0_1 = arith.constant 0 : index
    %0 = vector.load %arg1[%c0, %c0_0, %c0_1] : memref<1x16x32xf32, #tpu.memory_space<vmem>>, vector<1x16x32xf32>
    %1 = vector.shape_cast %0 : vector<1x16x32xf32> to vector<16x32xf32>
    %c0_2 = arith.constant 0 : index
    %c0_3 = arith.constant 0 : index
    %c0_4 = arith.constant 0 : index
    %2 = vector.load %arg2[%c0_2, %c0_3, %c0_4] : memref<1x16x32xf32, #tpu.memory_space<vmem>>, vector<1x16x32xf32>
    %3 = vector.shape_cast %2 : vector<1x16x32xf32> to vector<16x32xf32>
    %4 = arith.addf %1, %3 : vector<16x32xf32>
    %5 = arith.truncf %4 : vector<16x32xf32> to vector<16x32xbf16>
    %c0_5 = arith.constant 0 : index
    %c0_6 = arith.constant 0 : index
    %6 = vector.load %arg3[%c0_5, %c0_6] : memref<32x64xbf16, #tpu.memory_space<vmem>>, vector<32x64xbf16>
    %cst = arith.constant dense<0.000000e+00> : vector<16x64xf32>
    %7 = tpu.matmul %5, %6, %cst {dimension_numbers = #tpu.dot_dimension_numbers<[1], [0], [0], [1], [0, 0, 1, 1], [], []>} : vector<16x32xbf16>, vector<32x64xbf16>, vector<16x64xf32> -> vector<16x64xf32>
    %c0_7 = arith.constant 0 : index
    %c0_8 = arith.constant 0 : index
    %8 = vector.load %arg4[%c0_7, %c0_8] : memref<1x64xf32, #tpu.memory_space<vmem>>, vector<1x64xf32>
    %9 = vector.broadcast %8 : vector<1x64xf32> to vector<16x64xf32>
    %10 = arith.addf %7, %9 : vector<16x64xf32>
    %11 = arith.truncf %1 : vector<16x32xf32> to vector<16x32xbf16>
    %c0_9 = arith.constant 0 : index
    %c0_10 = arith.constant 0 : index
    %12 = vector.load %arg5[%c0_9, %c0_10] : memref<32x32xbf16, #tpu.memory_space<vmem>>, vector<32x32xbf16>
    %cst_11 = arith.constant dense<0.000000e+00> : vector<16x32xf32>
    %13 = tpu.matmul %11, %12, %cst_11 {dimension_numbers = #tpu.dot_dimension_numbers<[1], [0], [0], [1], [0, 0, 1, 1], [], []>} : vector<16x32xbf16>, vector<32x32xbf16>, vector<16x32xf32> -> vector<16x32xf32>
    %c0_12 = arith.constant 0 : index
    %c0_13 = arith.constant 0 : index
    %14 = vector.load %arg6[%c0_12, %c0_13] : memref<1x32xf32, #tpu.memory_space<vmem>>, vector<1x32xf32>
    %15 = vector.broadcast %14 : vector<1x32xf32> to vector<16x32xf32>
    %16 = arith.addf %13, %15 : vector<16x32xf32>
    %cst_14 = arith.constant 0.000000e+00 : f32
    %17 = vector.broadcast %cst_14 : f32 to vector<16x32xf32>
    %18 = vector.extract_strided_slice %10 {offsets = [0, 0], sizes = [16, 8], strides = [1, 1]} : vector<16x64xf32> to vector<16x8xf32>
    %19 = arith.truncf %18 : vector<16x8xf32> to vector<16x8xbf16>
    %20 = vector.extract_strided_slice %10 {offsets = [0, 32], sizes = [16, 8], strides = [1, 1]} : vector<16x64xf32> to vector<16x8xf32>
    %21 = arith.truncf %20 : vector<16x8xf32> to vector<16x8xbf16>
    %22 = vector.extract_strided_slice %16 {offsets = [0, 0], sizes = [16, 8], strides = [1, 1]} : vector<16x32xf32> to vector<16x8xf32>
    %23 = arith.truncf %22 : vector<16x8xf32> to vector<16x8xbf16>
    %cst_15 = arith.constant dense<0.000000e+00> : vector<16x16xf32>
    %24 = tpu.matmul %19, %21, %cst_15 {dimension_numbers = #tpu.dot_dimension_numbers<[1], [1], [0], [0], [0, 0, 1, 0], [], []>} : vector<16x8xbf16>, vector<16x8xbf16>, vector<16x16xf32> -> vector<16x16xf32>
    %cst_16 = arith.constant dense<0xFF800000> : vector<16xf32>
    %25 = vector.multi_reduction <maximumf>, %24, %cst_16 [1] : vector<16x16xf32> to vector<16xf32>
    %26 = vector.shape_cast %25 : vector<16xf32> to vector<16x1xf32>
    %27 = vector.broadcast %26 : vector<16x1xf32> to vector<16x16xf32>
    %28 = arith.subf %24, %27 : vector<16x16xf32>
    %29 = math.exp %28 : vector<16x16xf32>
    %cst_17 = arith.constant dense<0.000000e+00> : vector<16xf32>
    %30 = vector.multi_reduction <add>, %29, %cst_17 [1] : vector<16x16xf32> to vector<16xf32>
    %31 = vector.shape_cast %30 : vector<16xf32> to vector<16x1xf32>
    %32 = tpu.reciprocal %31 {approx = true} : vector<16x1xf32> -> vector<16x1xf32>
    %33 = vector.broadcast %32 : vector<16x1xf32> to vector<16x16xf32>
    %34 = arith.mulf %29, %33 : vector<16x16xf32>
    %35 = arith.truncf %34 : vector<16x16xf32> to vector<16x16xbf16>
    %cst_18 = arith.constant dense<0.000000e+00> : vector<16x8xf32>
    %36 = tpu.matmul %35, %23, %cst_18 {dimension_numbers = #tpu.dot_dimension_numbers<[1], [0], [0], [1], [0, 0, 1, 1], [], []>} : vector<16x16xbf16>, vector<16x8xbf16>, vector<16x8xf32> -> vector<16x8xf32>
    %37 = arith.truncf %36 : vector<16x8xf32> to vector<16x8xbf16>
    %c0_19 = arith.constant 0 : index
    %c0_20 = arith.constant 0 : index
    %c0_21 = arith.constant 0 : index
    %38 = vector.load %arg7[%c0_19, %c0_20, %c0_21] : memref<4x8x32xbf16, #tpu.memory_space<vmem>>, vector<1x8x32xbf16>
    %39 = vector.shape_cast %38 : vector<1x8x32xbf16> to vector<8x32xbf16>
    %cst_22 = arith.constant dense<0.000000e+00> : vector<16x32xf32>
    %40 = tpu.matmul %37, %39, %cst_22 {dimension_numbers = #tpu.dot_dimension_numbers<[1], [0], [0], [1], [0, 0, 1, 1], [], []>} : vector<16x8xbf16>, vector<8x32xbf16>, vector<16x32xf32> -> vector<16x32xf32>
    %41 = arith.addf %17, %40 : vector<16x32xf32>
    %42 = vector.extract_strided_slice %10 {offsets = [0, 8], sizes = [16, 8], strides = [1, 1]} : vector<16x64xf32> to vector<16x8xf32>
    %43 = arith.truncf %42 : vector<16x8xf32> to vector<16x8xbf16>
    %44 = vector.extract_strided_slice %10 {offsets = [0, 40], sizes = [16, 8], strides = [1, 1]} : vector<16x64xf32> to vector<16x8xf32>
    %45 = arith.truncf %44 : vector<16x8xf32> to vector<16x8xbf16>
    %46 = vector.extract_strided_slice %16 {offsets = [0, 8], sizes = [16, 8], strides = [1, 1]} : vector<16x32xf32> to vector<16x8xf32>
    %47 = arith.truncf %46 : vector<16x8xf32> to vector<16x8xbf16>
    %cst_23 = arith.constant dense<0.000000e+00> : vector<16x16xf32>
    %48 = tpu.matmul %43, %45, %cst_23 {dimension_numbers = #tpu.dot_dimension_numbers<[1], [1], [0], [0], [0, 0, 1, 0], [], []>} : vector<16x8xbf16>, vector<16x8xbf16>, vector<16x16xf32> -> vector<16x16xf32>
    %cst_24 = arith.constant dense<0xFF800000> : vector<16xf32>
    %49 = vector.multi_reduction <maximumf>, %48, %cst_24 [1] : vector<16x16xf32> to vector<16xf32>
    %50 = vector.shape_cast %49 : vector<16xf32> to vector<16x1xf32>
    %51 = vector.broadcast %50 : vector<16x1xf32> to vector<16x16xf32>
    %52 = arith.subf %48, %51 : vector<16x16xf32>
    %53 = math.exp %52 : vector<16x16xf32>
    %cst_25 = arith.constant dense<0.000000e+00> : vector<16xf32>
    %54 = vector.multi_reduction <add>, %53, %cst_25 [1] : vector<16x16xf32> to vector<16xf32>
    %55 = vector.shape_cast %54 : vector<16xf32> to vector<16x1xf32>
    %56 = tpu.reciprocal %55 {approx = true} : vector<16x1xf32> -> vector<16x1xf32>
    %57 = vector.broadcast %56 : vector<16x1xf32> to vector<16x16xf32>
    %58 = arith.mulf %53, %57 : vector<16x16xf32>
    %59 = arith.truncf %58 : vector<16x16xf32> to vector<16x16xbf16>
    %cst_26 = arith.constant dense<0.000000e+00> : vector<16x8xf32>
    %60 = tpu.matmul %59, %47, %cst_26 {dimension_numbers = #tpu.dot_dimension_numbers<[1], [0], [0], [1], [0, 0, 1, 1], [], []>} : vector<16x16xbf16>, vector<16x8xbf16>, vector<16x8xf32> -> vector<16x8xf32>
    %61 = arith.truncf %60 : vector<16x8xf32> to vector<16x8xbf16>
    %c1 = arith.constant 1 : index
    %c0_27 = arith.constant 0 : index
    %c0_28 = arith.constant 0 : index
    %62 = vector.load %arg7[%c1, %c0_27, %c0_28] : memref<4x8x32xbf16, #tpu.memory_space<vmem>>, vector<1x8x32xbf16>
    %63 = vector.shape_cast %62 : vector<1x8x32xbf16> to vector<8x32xbf16>
    %cst_29 = arith.constant dense<0.000000e+00> : vector<16x32xf32>
    %64 = tpu.matmul %61, %63, %cst_29 {dimension_numbers = #tpu.dot_dimension_numbers<[1], [0], [0], [1], [0, 0, 1, 1], [], []>} : vector<16x8xbf16>, vector<8x32xbf16>, vector<16x32xf32> -> vector<16x32xf32>
    %65 = arith.addf %41, %64 : vector<16x32xf32>
    %66 = vector.extract_strided_slice %10 {offsets = [0, 16], sizes = [16, 8], strides = [1, 1]} : vector<16x64xf32> to vector<16x8xf32>
    %67 = arith.truncf %66 : vector<16x8xf32> to vector<16x8xbf16>
    %68 = vector.extract_strided_slice %10 {offsets = [0, 48], sizes = [16, 8], strides = [1, 1]} : vector<16x64xf32> to vector<16x8xf32>
    %69 = arith.truncf %68 : vector<16x8xf32> to vector<16x8xbf16>
    %70 = vector.extract_strided_slice %16 {offsets = [0, 16], sizes = [16, 8], strides = [1, 1]} : vector<16x32xf32> to vector<16x8xf32>
    %71 = arith.truncf %70 : vector<16x8xf32> to vector<16x8xbf16>
    %cst_30 = arith.constant dense<0.000000e+00> : vector<16x16xf32>
    %72 = tpu.matmul %67, %69, %cst_30 {dimension_numbers = #tpu.dot_dimension_numbers<[1], [1], [0], [0], [0, 0, 1, 0], [], []>} : vector<16x8xbf16>, vector<16x8xbf16>, vector<16x16xf32> -> vector<16x16xf32>
    %cst_31 = arith.constant dense<0xFF800000> : vector<16xf32>
    %73 = vector.multi_reduction <maximumf>, %72, %cst_31 [1] : vector<16x16xf32> to vector<16xf32>
    %74 = vector.shape_cast %73 : vector<16xf32> to vector<16x1xf32>
    %75 = vector.broadcast %74 : vector<16x1xf32> to vector<16x16xf32>
    %76 = arith.subf %72, %75 : vector<16x16xf32>
    %77 = math.exp %76 : vector<16x16xf32>
    %cst_32 = arith.constant dense<0.000000e+00> : vector<16xf32>
    %78 = vector.multi_reduction <add>, %77, %cst_32 [1] : vector<16x16xf32> to vector<16xf32>
    %79 = vector.shape_cast %78 : vector<16xf32> to vector<16x1xf32>
    %80 = tpu.reciprocal %79 {approx = true} : vector<16x1xf32> -> vector<16x1xf32>
    %81 = vector.broadcast %80 : vector<16x1xf32> to vector<16x16xf32>
    %82 = arith.mulf %77, %81 : vector<16x16xf32>
    %83 = arith.truncf %82 : vector<16x16xf32> to vector<16x16xbf16>
    %cst_33 = arith.constant dense<0.000000e+00> : vector<16x8xf32>
    %84 = tpu.matmul %83, %71, %cst_33 {dimension_numbers = #tpu.dot_dimension_numbers<[1], [0], [0], [1], [0, 0, 1, 1], [], []>} : vector<16x16xbf16>, vector<16x8xbf16>, vector<16x8xf32> -> vector<16x8xf32>
    %85 = arith.truncf %84 : vector<16x8xf32> to vector<16x8xbf16>
    %c2 = arith.constant 2 : index
    %c0_34 = arith.constant 0 : index
    %c0_35 = arith.constant 0 : index
    %86 = vector.load %arg7[%c2, %c0_34, %c0_35] : memref<4x8x32xbf16, #tpu.memory_space<vmem>>, vector<1x8x32xbf16>
    %87 = vector.shape_cast %86 : vector<1x8x32xbf16> to vector<8x32xbf16>
    %cst_36 = arith.constant dense<0.000000e+00> : vector<16x32xf32>
    %88 = tpu.matmul %85, %87, %cst_36 {dimension_numbers = #tpu.dot_dimension_numbers<[1], [0], [0], [1], [0, 0, 1, 1], [], []>} : vector<16x8xbf16>, vector<8x32xbf16>, vector<16x32xf32> -> vector<16x32xf32>
    %89 = arith.addf %65, %88 : vector<16x32xf32>
    %90 = vector.extract_strided_slice %10 {offsets = [0, 24], sizes = [16, 8], strides = [1, 1]} : vector<16x64xf32> to vector<16x8xf32>
    %91 = arith.truncf %90 : vector<16x8xf32> to vector<16x8xbf16>
    %92 = vector.extract_strided_slice %10 {offsets = [0, 56], sizes = [16, 8], strides = [1, 1]} : vector<16x64xf32> to vector<16x8xf32>
    %93 = arith.truncf %92 : vector<16x8xf32> to vector<16x8xbf16>
    %94 = vector.extract_strided_slice %16 {offsets = [0, 24], sizes = [16, 8], strides = [1, 1]} : vector<16x32xf32> to vector<16x8xf32>
    %95 = arith.truncf %94 : vector<16x8xf32> to vector<16x8xbf16>
    %cst_37 = arith.constant dense<0.000000e+00> : vector<16x16xf32>
    %96 = tpu.matmul %91, %93, %cst_37 {dimension_numbers = #tpu.dot_dimension_numbers<[1], [1], [0], [0], [0, 0, 1, 0], [], []>} : vector<16x8xbf16>, vector<16x8xbf16>, vector<16x16xf32> -> vector<16x16xf32>
    %cst_38 = arith.constant dense<0xFF800000> : vector<16xf32>
    %97 = vector.multi_reduction <maximumf>, %96, %cst_38 [1] : vector<16x16xf32> to vector<16xf32>
    %98 = vector.shape_cast %97 : vector<16xf32> to vector<16x1xf32>
    %99 = vector.broadcast %98 : vector<16x1xf32> to vector<16x16xf32>
    %100 = arith.subf %96, %99 : vector<16x16xf32>
    %101 = math.exp %100 : vector<16x16xf32>
    %cst_39 = arith.constant dense<0.000000e+00> : vector<16xf32>
    %102 = vector.multi_reduction <add>, %101, %cst_39 [1] : vector<16x16xf32> to vector<16xf32>
    %103 = vector.shape_cast %102 : vector<16xf32> to vector<16x1xf32>
    %104 = tpu.reciprocal %103 {approx = true} : vector<16x1xf32> -> vector<16x1xf32>
    %105 = vector.broadcast %104 : vector<16x1xf32> to vector<16x16xf32>
    %106 = arith.mulf %101, %105 : vector<16x16xf32>
    %107 = arith.truncf %106 : vector<16x16xf32> to vector<16x16xbf16>
    %cst_40 = arith.constant dense<0.000000e+00> : vector<16x8xf32>
    %108 = tpu.matmul %107, %95, %cst_40 {dimension_numbers = #tpu.dot_dimension_numbers<[1], [0], [0], [1], [0, 0, 1, 1], [], []>} : vector<16x16xbf16>, vector<16x8xbf16>, vector<16x8xf32> -> vector<16x8xf32>
    %109 = arith.truncf %108 : vector<16x8xf32> to vector<16x8xbf16>
    %c3 = arith.constant 3 : index
    %c0_41 = arith.constant 0 : index
    %c0_42 = arith.constant 0 : index
    %110 = vector.load %arg7[%c3, %c0_41, %c0_42] : memref<4x8x32xbf16, #tpu.memory_space<vmem>>, vector<1x8x32xbf16>
    %111 = vector.shape_cast %110 : vector<1x8x32xbf16> to vector<8x32xbf16>
    %cst_43 = arith.constant dense<0.000000e+00> : vector<16x32xf32>
    %112 = tpu.matmul %109, %111, %cst_43 {dimension_numbers = #tpu.dot_dimension_numbers<[1], [0], [0], [1], [0, 0, 1, 1], [], []>} : vector<16x8xbf16>, vector<8x32xbf16>, vector<16x32xf32> -> vector<16x32xf32>
    %113 = arith.addf %89, %112 : vector<16x32xf32>
    %c0_44 = arith.constant 0 : index
    %c0_45 = arith.constant 0 : index
    %114 = vector.load %arg8[%c0_44, %c0_45] : memref<1x32xf32, #tpu.memory_space<vmem>>, vector<1x32xf32>
    %115 = vector.broadcast %114 : vector<1x32xf32> to vector<16x32xf32>
    %116 = arith.addf %113, %115 : vector<16x32xf32>
    %117 = arith.addf %1, %116 : vector<16x32xf32>
    %c0_46 = arith.constant 0 : index
    %c0_47 = arith.constant 0 : index
    %118 = vector.load %arg9[%c0_46, %c0_47] : memref<1x32xf32, #tpu.memory_space<vmem>>, vector<1x32xf32>
    %c0_48 = arith.constant 0 : index
    %c0_49 = arith.constant 0 : index
    %119 = vector.load %arg10[%c0_48, %c0_49] : memref<1x32xf32, #tpu.memory_space<vmem>>, vector<1x32xf32>
    %cst_50 = arith.constant dense<0.000000e+00> : vector<16xf32>
    %120 = vector.multi_reduction <add>, %117, %cst_50 [1] : vector<16x32xf32> to vector<16xf32>
    %121 = vector.shape_cast %120 : vector<16xf32> to vector<16x1xf32>
    %cst_51 = arith.constant 3.200000e+01 : f32
    %122 = vector.broadcast %cst_51 : f32 to vector<16x1xf32>
    %123 = arith.divf %121, %122 : vector<16x1xf32>
    %124 = arith.mulf %117, %117 : vector<16x32xf32>
    %cst_52 = arith.constant dense<0.000000e+00> : vector<16xf32>
    %125 = vector.multi_reduction <add>, %124, %cst_52 [1] : vector<16x32xf32> to vector<16xf32>
    %126 = vector.shape_cast %125 : vector<16xf32> to vector<16x1xf32>
    %cst_53 = arith.constant 3.200000e+01 : f32
    %127 = vector.broadcast %cst_53 : f32 to vector<16x1xf32>
    %128 = arith.divf %126, %127 : vector<16x1xf32>
    %129 = arith.mulf %123, %123 : vector<16x1xf32>
    %130 = arith.subf %128, %129 : vector<16x1xf32>
    %131 = vector.broadcast %123 : vector<16x1xf32> to vector<16x32xf32>
    %132 = arith.subf %117, %131 : vector<16x32xf32>
    %cst_54 = arith.constant 9.99999974E-6 : f32
    %133 = vector.broadcast %cst_54 : f32 to vector<16x1xf32>
    %134 = arith.addf %130, %133 : vector<16x1xf32>
    %135 = math.rsqrt %134 : vector<16x1xf32>
    %136 = vector.broadcast %135 : vector<16x1xf32> to vector<16x32xf32>
    %137 = arith.mulf %132, %136 : vector<16x32xf32>
    %138 = vector.broadcast %118 : vector<1x32xf32> to vector<16x32xf32>
    %139 = arith.mulf %137, %138 : vector<16x32xf32>
    %140 = vector.broadcast %119 : vector<1x32xf32> to vector<16x32xf32>
    %141 = arith.addf %139, %140 : vector<16x32xf32>
    %142 = arith.truncf %141 : vector<16x32xf32> to vector<16x32xbf16>
    %c0_55 = arith.constant 0 : index
    %c0_56 = arith.constant 0 : index
    %143 = vector.load %arg11[%c0_55, %c0_56] : memref<32x64xbf16, #tpu.memory_space<vmem>>, vector<32x64xbf16>
    %cst_57 = arith.constant dense<0.000000e+00> : vector<16x64xf32>
    %144 = tpu.matmul %142, %143, %cst_57 {dimension_numbers = #tpu.dot_dimension_numbers<[1], [0], [0], [1], [0, 0, 1, 1], [], []>} : vector<16x32xbf16>, vector<32x64xbf16>, vector<16x64xf32> -> vector<16x64xf32>
    %c0_58 = arith.constant 0 : index
    %c0_59 = arith.constant 0 : index
    %145 = vector.load %arg12[%c0_58, %c0_59] : memref<1x64xf32, #tpu.memory_space<vmem>>, vector<1x64xf32>
    %146 = vector.broadcast %145 : vector<1x64xf32> to vector<16x64xf32>
    %147 = arith.addf %144, %146 : vector<16x64xf32>
    %cst_60 = arith.constant 0.000000e+00 : f32
    %148 = vector.broadcast %cst_60 : f32 to vector<16x64xf32>
    %149 = arith.maximumf %147, %148 : vector<16x64xf32>
    %150 = arith.truncf %149 : vector<16x64xf32> to vector<16x64xbf16>
    %c0_61 = arith.constant 0 : index
    %c0_62 = arith.constant 0 : index
    %151 = vector.load %arg13[%c0_61, %c0_62] : memref<64x32xbf16, #tpu.memory_space<vmem>>, vector<64x32xbf16>
    %cst_63 = arith.constant dense<0.000000e+00> : vector<16x32xf32>
    %152 = tpu.matmul %150, %151, %cst_63 {dimension_numbers = #tpu.dot_dimension_numbers<[1], [0], [0], [1], [0, 0, 1, 1], [], []>} : vector<16x64xbf16>, vector<64x32xbf16>, vector<16x32xf32> -> vector<16x32xf32>
    %c0_64 = arith.constant 0 : index
    %c0_65 = arith.constant 0 : index
    %153 = vector.load %arg14[%c0_64, %c0_65] : memref<1x32xf32, #tpu.memory_space<vmem>>, vector<1x32xf32>
    %154 = vector.broadcast %153 : vector<1x32xf32> to vector<16x32xf32>
    %155 = arith.addf %152, %154 : vector<16x32xf32>
    %156 = arith.addf %141, %155 : vector<16x32xf32>
    %c0_66 = arith.constant 0 : index
    %c0_67 = arith.constant 0 : index
    %157 = vector.load %arg15[%c0_66, %c0_67] : memref<1x32xf32, #tpu.memory_space<vmem>>, vector<1x32xf32>
    %c0_68 = arith.constant 0 : index
    %c0_69 = arith.constant 0 : index
    %158 = vector.load %arg16[%c0_68, %c0_69] : memref<1x32xf32, #tpu.memory_space<vmem>>, vector<1x32xf32>
    %cst_70 = arith.constant dense<0.000000e+00> : vector<16xf32>
    %159 = vector.multi_reduction <add>, %156, %cst_70 [1] : vector<16x32xf32> to vector<16xf32>
    %160 = vector.shape_cast %159 : vector<16xf32> to vector<16x1xf32>
    %cst_71 = arith.constant 3.200000e+01 : f32
    %161 = vector.broadcast %cst_71 : f32 to vector<16x1xf32>
    %162 = arith.divf %160, %161 : vector<16x1xf32>
    %163 = arith.mulf %156, %156 : vector<16x32xf32>
    %cst_72 = arith.constant dense<0.000000e+00> : vector<16xf32>
    %164 = vector.multi_reduction <add>, %163, %cst_72 [1] : vector<16x32xf32> to vector<16xf32>
    %165 = vector.shape_cast %164 : vector<16xf32> to vector<16x1xf32>
    %cst_73 = arith.constant 3.200000e+01 : f32
    %166 = vector.broadcast %cst_73 : f32 to vector<16x1xf32>
    %167 = arith.divf %165, %166 : vector<16x1xf32>
    %168 = arith.mulf %162, %162 : vector<16x1xf32>
    %169 = arith.subf %167, %168 : vector<16x1xf32>
    %170 = vector.broadcast %162 : vector<16x1xf32> to vector<16x32xf32>
    %171 = arith.subf %156, %170 : vector<16x32xf32>
    %cst_74 = arith.constant 9.99999974E-6 : f32
    %172 = vector.broadcast %cst_74 : f32 to vector<16x1xf32>
    %173 = arith.addf %169, %172 : vector<16x1xf32>
    %174 = math.rsqrt %173 : vector<16x1xf32>
    %175 = vector.broadcast %174 : vector<16x1xf32> to vector<16x32xf32>
    %176 = arith.mulf %171, %175 : vector<16x32xf32>
    %177 = vector.broadcast %157 : vector<1x32xf32> to vector<16x32xf32>
    %178 = arith.mulf %176, %177 : vector<16x32xf32>
    %179 = vector.broadcast %158 : vector<1x32xf32> to vector<16x32xf32>
    %180 = arith.addf %178, %179 : vector<16x32xf32>
    %c0_75 = arith.constant 0 : index
    %c0_76 = arith.constant 0 : index
    %c0_77 = arith.constant 0 : index
    %181 = vector.load %arg17[%c0_75, %c0_76, %c0_77] : memref<1x16x32xf32, #tpu.memory_space<vmem>>, vector<1x16x32xf32>
    %182 = vector.shape_cast %181 : vector<1x16x32xf32> to vector<16x32xf32>
    %183 = vector.shape_cast %180 : vector<16x32xf32> to vector<1x16x32xf32>
    tpu.vector_store %arg17[%c0_75, %c0_76, %c0_77], %183 {strides = array<i32>} : memref<1x16x32xf32, #tpu.memory_space<vmem>>, vector<1x16x32xf32>,
    return
  }
  func.func @transform_0(%arg0: i32) -> (i32, i32, i32) {
    %c0_i32 = arith.constant 0 : i32
    %c0_i32_0 = arith.constant 0 : i32
    %c0_i32_1 = arith.constant 0 : i32
    return %arg0, %c0_i32, %c0_i32_0 : i32, i32, i32
  }
  func.func @transform_1(%arg0: i32) -> (i32, i32, i32) {
    %c0_i32 = arith.constant 0 : i32
    %c0_i32_0 = arith.constant 0 : i32
    %c0_i32_1 = arith.constant 0 : i32
    return %arg0, %c0_i32, %c0_i32_0 : i32, i32, i32
  }
  func.func @transform_2(%arg0: i32) -> (i32, i32) {
    %c0_i32 = arith.constant 0 : i32
    %c0_i32_0 = arith.constant 0 : i32
    %c0_i32_1 = arith.constant 0 : i32
    return %c0_i32, %c0_i32_0 : i32, i32
  }
  func.func @transform_3(%arg0: i32) -> (i32, i32) {
    %c0_i32 = arith.constant 0 : i32
    %c0_i32_0 = arith.constant 0 : i32
    %c0_i32_1 = arith.constant 0 : i32
    return %c0_i32, %c0_i32_0 : i32, i32
  }
  func.func @transform_4(%arg0: i32) -> (i32, i32) {
    %c0_i32 = arith.constant 0 : i32
    %c0_i32_0 = arith.constant 0 : i32
    %c0_i32_1 = arith.constant 0 : i32
    return %c0_i32, %c0_i32_0 : i32, i32
  }
  func.func @transform_5(%arg0: i32) -> (i32, i32) {
    %c0_i32 = arith.constant 0 : i32
    %c0_i32_0 = arith.constant 0 : i32
    %c0_i32_1 = arith.constant 0 : i32
    return %c0_i32, %c0_i32_0 : i32, i32
  }
  func.func @transform_6(%arg0: i32) -> (i32, i32, i32) {
    %c0_i32 = arith.constant 0 : i32
    %c0_i32_0 = arith.constant 0 : i32
    %c0_i32_1 = arith.constant 0 : i32
    %c0_i32_2 = arith.constant 0 : i32
    return %c0_i32, %c0_i32_0, %c0_i32_1 : i32, i32, i32
  }
  func.func @transform_7(%arg0: i32) -> (i32, i32) {
    %c0_i32 = arith.constant 0 : i32
    %c0_i32_0 = arith.constant 0 : i32
    %c0_i32_1 = arith.constant 0 : i32
    return %c0_i32, %c0_i32_0 : i32, i32
  }
  func.func @transform_8(%arg0: i32) -> (i32, i32) {
    %c0_i32 = arith.constant 0 : i32
    %c0_i32_0 = arith.constant 0 : i32
    %c0_i32_1 = arith.constant 0 : i32
    return %c0_i32, %c0_i32_0 : i32, i32
  }
  func.func @transform_9(%arg0: i32) -> (i32, i32) {
    %c0_i32 = arith.constant 0 : i32
    %c0_i32_0 = arith.constant 0 : i32
    %c0_i32_1 = arith.constant 0 : i32
    return %c0_i32, %c0_i32_0 : i32, i32
  }
  func.func @transform_10(%arg0: i32) -> (i32, i32) {
    %c0_i32 = arith.constant 0 : i32
    %c0_i32_0 = arith.constant 0 : i32
    %c0_i32_1 = arith.constant 0 : i32
    return %c0_i32, %c0_i32_0 : i32, i32
  }
  func.func @transform_11(%arg0: i32) -> (i32, i32) {
    %c0_i32 = arith.constant 0 : i32
    %c0_i32_0 = arith.constant 0 : i32
    %c0_i32_1 = arith.constant 0 : i32
    return %c0_i32, %c0_i32_0 : i32, i32
  }
  func.func @transform_12(%arg0: i32) -> (i32, i32) {
    %c0_i32 = arith.constant 0 : i32
    %c0_i32_0 = arith.constant 0 : i32
    %c0_i32_1 = arith.constant 0 : i32
    return %c0_i32, %c0_i32_0 : i32, i32
  }
  func.func @transform_13(%arg0: i32) -> (i32, i32) {
    %c0_i32 = arith.constant 0 : i32
    %c0_i32_0 = arith.constant 0 : i32
    %c0_i32_1 = arith.constant 0 : i32
    return %c0_i32, %c0_i32_0 : i32, i32
  }
  func.func @transform_14(%arg0: i32) -> (i32, i32) {
    %c0_i32 = arith.constant 0 : i32
    %c0_i32_0 = arith.constant 0 : i32
    %c0_i32_1 = arith.constant 0 : i32
    return %c0_i32, %c0_i32_0 : i32, i32
  }
  func.func @transform_15(%arg0: i32) -> (i32, i32) {
    %c0_i32 = arith.constant 0 : i32
    %c0_i32_0 = arith.constant 0 : i32
    %c0_i32_1 = arith.constant 0 : i32
    return %c0_i32, %c0_i32_0 : i32, i32
  }
  func.func @transform_16(%arg0: i32) -> (i32, i32, i32) {
    %c0_i32 = arith.constant 0 : i32
    %c0_i32_0 = arith.constant 0 : i32
    %c0_i32_1 = arith.constant 0 : i32
    return %arg0, %c0_i32, %c0_i32_0 : i32, i32, i32
  }
}

</mosaic_0001>

<llo_original>
// kernel: encoder_layer.1
$region0: #{encoder_layer.1}
  #allocation0 [shape = 'u32[]', space=smem, size = 0x4, offset = 0x4, fixed_abs, tag = 'smem constant byte address 0x4 - core index']
  #allocation1 [shape = 'u32[144,128]{1,0:T(1,128)}', space=vmem, size = 0x12000, scoped, tag = 'internal scratch']
  %s0 = inlined_call_operand.vmem [shape: f32[2,16,32], index: 0, kind: input, shape index: {}]
  %s1 = inlined_call_operand.vmem [shape: f32[2,16,32], index: 1, kind: input, shape index: {}]
  %s2 = inlined_call_operand.vmem [shape: bf16[32,64], index: 2, kind: input, shape index: {}]
  %s3 = inlined_call_operand.vmem [shape: f32[1,64], index: 3, kind: input, shape index: {}]
  %s4 = inlined_call_operand.vmem [shape: bf16[32,32], index: 4, kind: input, shape index: {}]
  %s5 = inlined_call_operand.vmem [shape: f32[1,32], index: 5, kind: input, shape index: {}]
  %s6 = inlined_call_operand.vmem [shape: bf16[4,8,32], index: 6, kind: input, shape index: {}]
  %s7 = inlined_call_operand.vmem [shape: f32[1,32], index: 7, kind: input, shape index: {}]
  %s8 = inlined_call_operand.vmem [shape: f32[1,32], index: 8, kind: input, shape index: {}]
  %s9 = inlined_call_operand.vmem [shape: f32[1,32], index: 9, kind: input, shape index: {}]
  %s10 = inlined_call_operand.vmem [shape: bf16[32,64], index: 10, kind: input, shape index: {}]
  %s11 = inlined_call_operand.vmem [shape: f32[1,64], index: 11, kind: input, shape index: {}]
  %s12 = inlined_call_operand.vmem [shape: bf16[64,32], index: 12, kind: input, shape index: {}]
  %s13 = inlined_call_operand.vmem [shape: f32[1,32], index: 13, kind: input, shape index: {}]
  %s14 = inlined_call_operand.vmem [shape: f32[1,32], index: 14, kind: input, shape index: {}]
  %s15 = inlined_call_operand.vmem [shape: f32[1,32], index: 15, kind: input, shape index: {}]
  %s16 = inlined_call_operand.vmem [shape: f32[2,16,32], index: 16, kind: output, shape index: {}]
  %s17 = sld [smem:[#allocation0]]
  $region97: #{encoder_layer.1} parent=0
    _
  %s19 = ssub.s32 1, %s17
  %s20 = scalar_select 0, %s19, %s17
  loop: start=0, step=1, limit=4
  $region2: #{encoder_layer.1} parent=0 // loop_pre_header
    _
  $region3: #{encoder_layer.1} parent=0 // loop_header
    %s22 = sphi 0, %s26
    %p23 = scmp.ge.s32.totalorder %s22, 4
    %s32 = sphi 0, %s34
    %s35 = sphi 0, %s32
    %s36 = sphi 0, %s35
    %s52 = sphi 0, %s36
    %s58 = sphi 0, %s60
    %s61 = sphi 0, %s58
    %s62 = sphi 0, %s61
    %s78 = sphi 0, %s62
    %s82 = sphi 0, %s82
    %s84 = sphi 0, %s82
    %s85 = sphi 0, %s84
    %s99 = sphi 0, %s85
    %s103 = sphi 0, %s103
    %s105 = sphi 0, %s103
    %s106 = sphi 0, %s105
    %s120 = sphi 0, %s106
    %s124 = sphi 0, %s124
    %s126 = sphi 0, %s124
    %s127 = sphi 0, %s126
    %s141 = sphi 0, %s127
    %s145 = sphi 0, %s145
    %s147 = sphi 0, %s145
    %s148 = sphi 0, %s147
    %s162 = sphi 0, %s148
    %s166 = sphi 0, %s166
    %s168 = sphi 0, %s166
    %s169 = sphi 0, %s168
    %s183 = sphi 0, %s169
    %s187 = sphi 0, %s187
    %s189 = sphi 0, %s187
    %s190 = sphi 0, %s189
    %s204 = sphi 0, %s190
    %s208 = sphi 0, %s208
    %s210 = sphi 0, %s208
    %s211 = sphi 0, %s210
    %s225 = sphi 0, %s211
    %s229 = sphi 0, %s229
    %s231 = sphi 0, %s229
    %s232 = sphi 0, %s231
    %s246 = sphi 0, %s232
    %s250 = sphi 0, %s250
    %s252 = sphi 0, %s250
    %s253 = sphi 0, %s252
    %s267 = sphi 0, %s253
    %s271 = sphi 0, %s271
    %s273 = sphi 0, %s271
    %s274 = sphi 0, %s273
    %s288 = sphi 0, %s274
    %s292 = sphi 0, %s292
    %s294 = sphi 0, %s292
    %s295 = sphi 0, %s294
    %s309 = sphi 0, %s295
    %s313 = sphi 0, %s313
    %s315 = sphi 0, %s313
    %s316 = sphi 0, %s315
    %s330 = sphi 0, %s316
    %s334 = sphi 0, %s334
    %s336 = sphi 0, %s334
    %s337 = sphi 0, %s336
    %s351 = sphi 0, %s337
    %s355 = sphi 0, %s355
    %s357 = sphi 0, %s355
    %s358 = sphi 0, %s357
    %s372 = sphi 0, %s358
    %s378 = sphi 0, %s380
    %s381 = sphi 0, %s378
    %s382 = sphi 0, %s381
    %s398 = sphi 0, %s382
  $region4: #{encoder_layer.1} parent=0 // loop_header_branch
    %25 = sbr.rel (%p23) target = $region8
  $region5: #{encoder_layer.1} parent=0 // loop_body
    %s27 = ssub.s32 %s22, 1
    %s28 = ssub.s32 %s22, 2
    %s29 = sadd.s32 %s22, 1
    %s30 = ssub.s32 %s22, %s29
    %p31 = scmp.eq.s32.totalorder %s30, 0
    %s33 = sadd.s32 %s32, 1
    %s34 = scalar_select %p31, %s32, %s33
    %p37 = pneg %p31
    %p38 = scmp.eq.s32.totalorder %s22, 1
    %p39 = por %p37, %p38
    %p40 = scmp.ne.s32.totalorder %s32, %s35
    %p41 = scmp.eq.s32.totalorder %s22, 0
    %p42 = por %p40, %p41
    %p43 = scmp.ne.s32.totalorder %s32, %s35
    %p44 = scmp.eq.s32.totalorder %s27, 1
    %p45 = por %p43, %p44
    %p46 = scmp.ne.s32.totalorder %s35, %s36
    %p47 = scmp.eq.s32.totalorder %s27, 0
    %p48 = por %p46, %p47
    %p49 = scmp.ne.s32.totalorder %s35, %s36
    %p50 = scmp.eq.s32.totalorder %s28, 1
    %p51 = por %p49, %p50
    %p53 = scmp.ne.s32.totalorder %s36, %s52
    %p54 = scmp.eq.s32.totalorder %s28, 0
    %p55 = por %p53, %p54
    %s56 = ssub.s32 %s22, %s29
    %p57 = scmp.eq.s32.totalorder %s56, 0
    %s59 = sadd.s32 %s58, 1
    %s60 = scalar_select %p57, %s58, %s59
    %p63 = pneg %p57
    %p64 = scmp.eq.s32.totalorder %s22, 1
    %p65 = por %p63, %p64
    %p66 = scmp.ne.s32.totalorder %s58, %s61
    %p67 = scmp.eq.s32.totalorder %s22, 0
    %p68 = por %p66, %p67
    %p69 = scmp.ne.s32.totalorder %s58, %s61
    %p70 = scmp.eq.s32.totalorder %s27, 1
    %p71 = por %p69, %p70
    %p72 = scmp.ne.s32.totalorder %s61, %s62
    %p73 = scmp.eq.s32.totalorder %s27, 0
    %p74 = por %p72, %p73
    %p75 = scmp.ne.s32.totalorder %s61, %s62
    %p76 = scmp.eq.s32.totalorder %s28, 1
    %p77 = por %p75, %p76
    %p79 = scmp.ne.s32.totalorder %s62, %s78
    %p80 = scmp.eq.s32.totalorder %s28, 0
    %p81 = por %p79, %p80
    %s83 = sadd.s32 %s82, 1
    %p86 = scmp.eq.s32.totalorder %s22, 1
    %p87 = scmp.ne.s32.totalorder %s82, %s84
    %p88 = scmp.eq.s32.totalorder %s22, 0
    %p89 = por %p87, %p88
    %p90 = scmp.ne.s32.totalorder %s82, %s84
    %p91 = scmp.eq.s32.totalorder %s27, 1
    %p92 = por %p90, %p91
    %p93 = scmp.ne.s32.totalorder %s84, %s85
    %p94 = scmp.eq.s32.totalorder %s27, 0
    %p95 = por %p93, %p94
    %p96 = scmp.ne.s32.totalorder %s84, %s85
    %p97 = scmp.eq.s32.totalorder %s28, 1
    %p98 = por %p96, %p97
    %p100 = scmp.ne.s32.totalorder %s85, %s99
    %p101 = scmp.eq.s32.totalorder %s28, 0
    %p102 = por %p100, %p101
    %s104 = sadd.s32 %s103, 1
    %p107 = scmp.eq.s32.totalorder %s22, 1
    %p108 = scmp.ne.s32.totalorder %s103, %s105
    %p109 = scmp.eq.s32.totalorder %s22, 0
    %p110 = por %p108, %p109
    %p111 = scmp.ne.s32.totalorder %s103, %s105
    %p112 = scmp.eq.s32.totalorder %s27, 1
    %p113 = por %p111, %p112
    %p114 = scmp.ne.s32.totalorder %s105, %s106
    %p115 = scmp.eq.s32.totalorder %s27, 0
    %p116 = por %p114, %p115
    %p117 = scmp.ne.s32.totalorder %s105, %s106
    %p118 = scmp.eq.s32.totalorder %s28, 1
    %p119 = por %p117, %p118
    %p121 = scmp.ne.s32.totalorder %s106, %s120
    %p122 = scmp.eq.s32.totalorder %s28, 0
    %p123 = por %p121, %p122
    %s125 = sadd.s32 %s124, 1
    %p128 = scmp.eq.s32.totalorder %s22, 1
    %p129 = scmp.ne.s32.totalorder %s124, %s126
    %p130 = scmp.eq.s32.totalorder %s22, 0
    %p131 = por %p129, %p130
    %p132 = scmp.ne.s32.totalorder %s124, %s126
    %p133 = scmp.eq.s32.totalorder %s27, 1
    %p134 = por %p132, %p133
    %p135 = scmp.ne.s32.totalorder %s126, %s127
    %p136 = scmp.eq.s32.totalorder %s27, 0
    %p137 = por %p135, %p136
    %p138 = scmp.ne.s32.totalorder %s126, %s127
    %p139 = scmp.eq.s32.totalorder %s28, 1
    %p140 = por %p138, %p139
    %p142 = scmp.ne.s32.totalorder %s127, %s141
    %p143 = scmp.eq.s32.totalorder %s28, 0
    %p144 = por %p142, %p143
    %s146 = sadd.s32 %s145, 1
    %p149 = scmp.eq.s32.totalorder %s22, 1
    %p150 = scmp.ne.s32.totalorder %s145, %s147
    %p151 = scmp.eq.s32.totalorder %s22, 0
    %p152 = por %p150, %p151
    %p153 = scmp.ne.s32.totalorder %s145, %s147
    %p154 = scmp.eq.s32.totalorder %s27, 1
    %p155 = por %p153, %p154
    %p156 = scmp.ne.s32.totalorder %s147, %s148
    %p157 = scmp.eq.s32.totalorder %s27, 0
    %p158 = por %p156, %p157
    %p159 = scmp.ne.s32.totalorder %s147, %s148
    %p160 = scmp.eq.s32.totalorder %s28, 1
    %p161 = por %p159, %p160
    %p163 = scmp.ne.s32.totalorder %s148, %s162
    %p164 = scmp.eq.s32.totalorder %s28, 0
    %p165 = por %p163, %p164
    %s167 = sadd.s32 %s166, 1
    %p170 = scmp.eq.s32.totalorder %s22, 1
    %p171 = scmp.ne.s32.totalorder %s166, %s168
    %p172 = scmp.eq.s32.totalorder %s22, 0
    %p173 = por %p171, %p172
    %p174 = scmp.ne.s32.totalorder %s166, %s168
    %p175 = scmp.eq.s32.totalorder %s27, 1
    %p176 = por %p174, %p175
    %p177 = scmp.ne.s32.totalorder %s168, %s169
    %p178 = scmp.eq.s32.totalorder %s27, 0
    %p179 = por %p177, %p178
    %p180 = scmp.ne.s32.totalorder %s168, %s169
    %p181 = scmp.eq.s32.totalorder %s28, 1
    %p182 = por %p180, %p181
    %p184 = scmp.ne.s32.totalorder %s169, %s183
    %p185 = scmp.eq.s32.totalorder %s28, 0
    %p186 = por %p184, %p185
    %s188 = sadd.s32 %s187, 1
    %p191 = scmp.eq.s32.totalorder %s22, 1
    %p192 = scmp.ne.s32.totalorder %s187, %s189
    %p193 = scmp.eq.s32.totalorder %s22, 0
    %p194 = por %p192, %p193
    %p195 = scmp.ne.s32.totalorder %s187, %s189
    %p196 = scmp.eq.s32.totalorder %s27, 1
    %p197 = por %p195, %p196
    %p198 = scmp.ne.s32.totalorder %s189, %s190
    %p199 = scmp.eq.s32.totalorder %s27, 0
    %p200 = por %p198, %p199
    %p201 = scmp.ne.s32.totalorder %s189, %s190
    %p202 = scmp.eq.s32.totalorder %s28, 1
    %p203 = por %p201, %p202
    %p205 = scmp.ne.s32.totalorder %s190, %s204
    %p206 = scmp.eq.s32.totalorder %s28, 0
    %p207 = por %p205, %p206
    %s209 = sadd.s32 %s208, 1
    %p212 = scmp.eq.s32.totalorder %s22, 1
    %p213 = scmp.ne.s32.totalorder %s208, %s210
    %p214 = scmp.eq.s32.totalorder %s22, 0
    %p215 = por %p213, %p214
    %p216 = scmp.ne.s32.totalorder %s208, %s210
    %p217 = scmp.eq.s32.totalorder %s27, 1
    %p218 = por %p216, %p217
    %p219 = scmp.ne.s32.totalorder %s210, %s211
    %p220 = scmp.eq.s32.totalorder %s27, 0
    %p221 = por %p219, %p220
    %p222 = scmp.ne.s32.totalorder %s210, %s211
    %p223 = scmp.eq.s32.totalorder %s28, 1
    %p224 = por %p222, %p223
    %p226 = scmp.ne.s32.totalorder %s211, %s225
    %p227 = scmp.eq.s32.totalorder %s28, 0
    %p228 = por %p226, %p227
    %s230 = sadd.s32 %s229, 1
    %p233 = scmp.eq.s32.totalorder %s22, 1
    %p234 = scmp.ne.s32.totalorder %s229, %s231
    %p235 = scmp.eq.s32.totalorder %s22, 0
    %p236 = por %p234, %p235
    %p237 = scmp.ne.s32.totalorder %s229, %s231
    %p238 = scmp.eq.s32.totalorder %s27, 1
    %p239 = por %p237, %p238
    %p240 = scmp.ne.s32.totalorder %s231, %s232
    %p241 = scmp.eq.s32.totalorder %s27, 0
    %p242 = por %p240, %p241
    %p243 = scmp.ne.s32.totalorder %s231, %s232
    %p244 = scmp.eq.s32.totalorder %s28, 1
    %p245 = por %p243, %p244
    %p247 = scmp.ne.s32.totalorder %s232, %s246
    %p248 = scmp.eq.s32.totalorder %s28, 0
    %p249 = por %p247, %p248
    %s251 = sadd.s32 %s250, 1
    %p254 = scmp.eq.s32.totalorder %s22, 1
    %p255 = scmp.ne.s32.totalorder %s250, %s252
    %p256 = scmp.eq.s32.totalorder %s22, 0
    %p257 = por %p255, %p256
    %p258 = scmp.ne.s32.totalorder %s250, %s252
    %p259 = scmp.eq.s32.totalorder %s27, 1
    %p260 = por %p258, %p259
    %p261 = scmp.ne.s32.totalorder %s252, %s253
    %p262 = scmp.eq.s32.totalorder %s27, 0
    %p263 = por %p261, %p262
    %p264 = scmp.ne.s32.totalorder %s252, %s253
    %p265 = scmp.eq.s32.totalorder %s28, 1
    %p266 = por %p264, %p265
    %p268 = scmp.ne.s32.totalorder %s253, %s267
    %p269 = scmp.eq.s32.totalorder %s28, 0
    %p270 = por %p268, %p269
    %s272 = sadd.s32 %s271, 1
    %p275 = scmp.eq.s32.totalorder %s22, 1
    %p276 = scmp.ne.s32.totalorder %s271, %s273
    %p277 = scmp.eq.s32.totalorder %s22, 0
    %p278 = por %p276, %p277
    %p279 = scmp.ne.s32.totalorder %s271, %s273
    %p280 = scmp.eq.s32.totalorder %s27, 1
    %p281 = por %p279, %p280
    %p282 = scmp.ne.s32.totalorder %s273, %s274
    %p283 = scmp.eq.s32.totalorder %s27, 0
    %p284 = por %p282, %p283
    %p285 = scmp.ne.s32.totalorder %s273, %s274
    %p286 = scmp.eq.s32.totalorder %s28, 1
    %p287 = por %p285, %p286
    %p289 = scmp.ne.s32.totalorder %s274, %s288
    %p290 = scmp.eq.s32.totalorder %s28, 0
    %p291 = por %p289, %p290
    %s293 = sadd.s32 %s292, 1
    %p296 = scmp.eq.s32.totalorder %s22, 1
    %p297 = scmp.ne.s32.totalorder %s292, %s294
    %p298 = scmp.eq.s32.totalorder %s22, 0
    %p299 = por %p297, %p298
    %p300 = scmp.ne.s32.totalorder %s292, %s294
    %p301 = scmp.eq.s32.totalorder %s27, 1
    %p302 = por %p300, %p301
    %p303 = scmp.ne.s32.totalorder %s294, %s295
    %p304 = scmp.eq.s32.totalorder %s27, 0
    %p305 = por %p303, %p304
    %p306 = scmp.ne.s32.totalorder %s294, %s295
    %p307 = scmp.eq.s32.totalorder %s28, 1
    %p308 = por %p306, %p307
    %p310 = scmp.ne.s32.totalorder %s295, %s309
    %p311 = scmp.eq.s32.totalorder %s28, 0
    %p312 = por %p310, %p311
    %s314 = sadd.s32 %s313, 1
    %p317 = scmp.eq.s32.totalorder %s22, 1
    %p318 = scmp.ne.s32.totalorder %s313, %s315
    %p319 = scmp.eq.s32.totalorder %s22, 0
    %p320 = por %p318, %p319
    %p321 = scmp.ne.s32.totalorder %s313, %s315
    %p322 = scmp.eq.s32.totalorder %s27, 1
    %p323 = por %p321, %p322
    %p324 = scmp.ne.s32.totalorder %s315, %s316
    %p325 = scmp.eq.s32.totalorder %s27, 0
    %p326 = por %p324, %p325
    %p327 = scmp.ne.s32.totalorder %s315, %s316
    %p328 = scmp.eq.s32.totalorder %s28, 1
    %p329 = por %p327, %p328
    %p331 = scmp.ne.s32.totalorder %s316, %s330
    %p332 = scmp.eq.s32.totalorder %s28, 0
    %p333 = por %p331, %p332
    %s335 = sadd.s32 %s334, 1
    %p338 = scmp.eq.s32.totalorder %s22, 1
    %p339 = scmp.ne.s32.totalorder %s334, %s336
    %p340 = scmp.eq.s32.totalorder %s22, 0
    %p341 = por %p339, %p340
    %p342 = scmp.ne.s32.totalorder %s334, %s336
    %p343 = scmp.eq.s32.totalorder %s27, 1
    %p344 = por %p342, %p343
    %p345 = scmp.ne.s32.totalorder %s336, %s337
    %p346 = scmp.eq.s32.totalorder %s27, 0
    %p347 = por %p345, %p346
    %p348 = scmp.ne.s32.totalorder %s336, %s337
    %p349 = scmp.eq.s32.totalorder %s28, 1
    %p350 = por %p348, %p349
    %p352 = scmp.ne.s32.totalorder %s337, %s351
    %p353 = scmp.eq.s32.totalorder %s28, 0
    %p354 = por %p352, %p353
    %s356 = sadd.s32 %s355, 1
    %p359 = scmp.eq.s32.totalorder %s22, 1
    %p360 = scmp.ne.s32.totalorder %s355, %s357
    %p361 = scmp.eq.s32.totalorder %s22, 0
    %p362 = por %p360, %p361
    %p363 = scmp.ne.s32.totalorder %s355, %s357
    %p364 = scmp.eq.s32.totalorder %s27, 1
    %p365 = por %p363, %p364
    %p366 = scmp.ne.s32.totalorder %s357, %s358
    %p367 = scmp.eq.s32.totalorder %s27, 0
    %p368 = por %p366, %p367
    %p369 = scmp.ne.s32.totalorder %s357, %s358
    %p370 = scmp.eq.s32.totalorder %s28, 1
    %p371 = por %p369, %p370
    %p373 = scmp.ne.s32.totalorder %s358, %s372
    %p374 = scmp.eq.s32.totalorder %s28, 0
    %p375 = por %p373, %p374
    %s376 = ssub.s32 %s22, %s29
    %p377 = scmp.eq.s32.totalorder %s376, 0
    %s379 = sadd.s32 %s378, 1
    %s380 = scalar_select %p377, %s378, %s379
    %p383 = pneg %p377
    %p384 = scmp.eq.s32.totalorder %s22, 1
    %p385 = por %p383, %p384
    %p386 = scmp.ne.s32.totalorder %s378, %s381
    %p387 = scmp.eq.s32.totalorder %s22, 0
    %p388 = por %p386, %p387
    %p389 = scmp.ne.s32.totalorder %s378, %s381
    %p390 = scmp.eq.s32.totalorder %s27, 1
    %p391 = por %p389, %p390
    %p392 = scmp.ne.s32.totalorder %s381, %s382
    %p393 = scmp.eq.s32.totalorder %s27, 0
    %p394 = por %p392, %p393
    %p395 = scmp.ne.s32.totalorder %s381, %s382
    %p396 = scmp.eq.s32.totalorder %s28, 1
    %p397 = por %p395, %p396
    %p399 = scmp.ne.s32.totalorder %s382, %s398
    %p400 = scmp.eq.s32.totalorder %s28, 0
    %p401 = por %p399, %p400
    %p402 = scmp.le.s32.totalorder 1, %s22
    %p403 = scmp.lt.s32.totalorder %s22, 3
    %p404 = pnand %p402, %p403
    %p405 = pneg %p404
    // Predicated region
    $region9: #{encoder_layer.1} parent=5 // pred_check
      _
    $region10: #{encoder_layer.1} parent=5 // pred_check_branch
      %407 = sbr.rel (%p404) target = $region12
    $region11: #{encoder_layer.1} parent=5 // pred_region
      %s408 = ssub.s32 %s22, 1
      // Predicated region
      $region13: #{encoder_layer.1} parent=11 // pred_check
        %p409 = pneg %p95
      $region14: #{encoder_layer.1} parent=11 // pred_check_branch
        %411 = sbr.rel (%p409) target = $region16
      $region15: #{encoder_layer.1} parent=11 // pred_region
        _
      $region16: #{encoder_layer.1} parent=11 // pred_fallthru
        _
      // Predicated region
      $region17: #{encoder_layer.1} parent=11 // pred_check
        %p412 = pneg %p116
      $region18: #{encoder_layer.1} parent=11 // pred_check_branch
        %414 = sbr.rel (%p412) target = $region20
      $region19: #{encoder_layer.1} parent=11 // pred_region
        _
      $region20: #{encoder_layer.1} parent=11 // pred_fallthru
        _
      // Predicated region
      $region21: #{encoder_layer.1} parent=11 // pred_check
        %p415 = pneg %p137
      $region22: #{encoder_layer.1} parent=11 // pred_check_branch
        %417 = sbr.rel (%p415) target = $region24
      $region23: #{encoder_layer.1} parent=11 // pred_region
        _
      $region24: #{encoder_layer.1} parent=11 // pred_fallthru
        _
      // Predicated region
      $region25: #{encoder_layer.1} parent=11 // pred_check
        %p418 = pneg %p158
      $region26: #{encoder_layer.1} parent=11 // pred_check_branch
        %420 = sbr.rel (%p418) target = $region28
      $region27: #{encoder_layer.1} parent=11 // pred_region
        _
      $region28: #{encoder_layer.1} parent=11 // pred_fallthru
        _
      // Predicated region
      $region29: #{encoder_layer.1} parent=11 // pred_check
        %p421 = pneg %p179
      $region30: #{encoder_layer.1} parent=11 // pred_check_branch
        %423 = sbr.rel (%p421) target = $region32
      $region31: #{encoder_layer.1} parent=11 // pred_region
        _
      $region32: #{encoder_layer.1} parent=11 // pred_fallthru
        _
      // Predicated region
      $region33: #{encoder_layer.1} parent=11 // pred_check
        %p424 = pneg %p200
      $region34: #{encoder_layer.1} parent=11 // pred_check_branch
        %426 = sbr.rel (%p424) target = $region36
      $region35: #{encoder_layer.1} parent=11 // pred_region
        _
      $region36: #{encoder_layer.1} parent=11 // pred_fallthru
        _
      // Predicated region
      $region37: #{encoder_layer.1} parent=11 // pred_check
        %p427 = pneg %p221
      $region38: #{encoder_layer.1} parent=11 // pred_check_branch
        %429 = sbr.rel (%p427) target = $region40
      $region39: #{encoder_layer.1} parent=11 // pred_region
        _
      $region40: #{encoder_layer.1} parent=11 // pred_fallthru
        _
      // Predicated region
      $region41: #{encoder_layer.1} parent=11 // pred_check
        %p430 = pneg %p242
      $region42: #{encoder_layer.1} parent=11 // pred_check_branch
        %432 = sbr.rel (%p430) target = $region44
      $region43: #{encoder_layer.1} parent=11 // pred_region
        _
      $region44: #{encoder_layer.1} parent=11 // pred_fallthru
        _
      // Predicated region
      $region45: #{encoder_layer.1} parent=11 // pred_check
        %p433 = pneg %p263
      $region46: #{encoder_layer.1} parent=11 // pred_check_branch
        %435 = sbr.rel (%p433) target = $region48
      $region47: #{encoder_layer.1} parent=11 // pred_region
        _
      $region48: #{encoder_layer.1} parent=11 // pred_fallthru
        _
      // Predicated region
      $region49: #{encoder_layer.1} parent=11 // pred_check
        %p436 = pneg %p284
      $region50: #{encoder_layer.1} parent=11 // pred_check_branch
        %438 = sbr.rel (%p436) target = $region52
      $region51: #{encoder_layer.1} parent=11 // pred_region
        _
      $region52: #{encoder_layer.1} parent=11 // pred_fallthru
        _
      // Predicated region
      $region53: #{encoder_layer.1} parent=11 // pred_check
        %p439 = pneg %p305
      $region54: #{encoder_layer.1} parent=11 // pred_check_branch
        %441 = sbr.rel (%p439) target = $region56
      $region55: #{encoder_layer.1} parent=11 // pred_region
        _
      $region56: #{encoder_layer.1} parent=11 // pred_fallthru
        _
      // Predicated region
      $region57: #{encoder_layer.1} parent=11 // pred_check
        %p442 = pneg %p326
      $region58: #{encoder_layer.1} parent=11 // pred_check_branch
        %444 = sbr.rel (%p442) target = $region60
      $region59: #{encoder_layer.1} parent=11 // pred_region
        _
      $region60: #{encoder_layer.1} parent=11 // pred_fallthru
        _
      // Predicated region
      $region61: #{encoder_layer.1} parent=11 // pred_check
        %p445 = pneg %p347
      $region62: #{encoder_layer.1} parent=11 // pred_check_branch
        %447 = sbr.rel (%p445) target = $region64
      $region63: #{encoder_layer.1} parent=11 // pred_region
        _
      $region64: #{encoder_layer.1} parent=11 // pred_fallthru
        _
      // Predicated region
      $region65: #{encoder_layer.1} parent=11 // pred_check
        %p448 = pneg %p368
      $region66: #{encoder_layer.1} parent=11 // pred_check_branch
        %450 = sbr.rel (%p448) target = $region68
      $region67: #{encoder_layer.1} parent=11 // pred_region
        _
      $region68: #{encoder_layer.1} parent=11 // pred_fallthru
        _
    $region12: #{encoder_layer.1} parent=5 // pred_fallthru
      _
    %p451 = scmp.lt.s32.totalorder %s22, 2
    // Predicated region
    $region69: #{encoder_layer.1} parent=5 // pred_check
      %p452 = pneg %p451
    $region70: #{encoder_layer.1} parent=5 // pred_check_branch
      %454 = sbr.rel (%p452) target = $region72
    $region71: #{encoder_layer.1} parent=5 // pred_region
      // Predicated region
      $region73: #{encoder_layer.1} parent=71 // pred_check
        %p455 = pneg %p42
      $region74: #{encoder_layer.1} parent=71 // pred_check_branch
        %457 = sbr.rel (%p455) target = $region76
      $region75: #{encoder_layer.1} parent=71 // pred_region
        %p458 = scmp.lt.s32.totalorder %s22, 1
        %s459 = scalar_select %p458, %s22, 1
        %s460 = smul.addr %s459, 2
        %s461 = smul.addr %s460, 8
        %s462 = scalar_lea.vmem %s0, %s461
      $region76: #{encoder_layer.1} parent=71 // pred_fallthru
        _
      // Predicated region
      $region77: #{encoder_layer.1} parent=71 // pred_check
        %p463 = pneg %p68
      $region78: #{encoder_layer.1} parent=71 // pred_check_branch
        %465 = sbr.rel (%p463) target = $region80
      $region79: #{encoder_layer.1} parent=71 // pred_region
        %p466 = scmp.lt.s32.totalorder %s22, 1
        %s467 = scalar_select %p466, %s22, 1
        %s468 = smul.addr %s467, 2
        %s469 = smul.addr %s468, 8
        %s470 = scalar_lea.vmem %s1, %s469
      $region80: #{encoder_layer.1} parent=71 // pred_fallthru
        _
    $region72: #{encoder_layer.1} parent=5 // pred_fallthru
      _
    %p471 = scmp.le.s32.totalorder 1, %s22
    %p472 = scmp.lt.s32.totalorder %s22, 3
    %p473 = pnand %p471, %p472
    %p474 = pneg %p473
    // Predicated region
    $region81: #{encoder_layer.1} parent=5 // pred_check
      _
    $region82: #{encoder_layer.1} parent=5 // pred_check_branch
      %476 = sbr.rel (%p473) target = $region84
    $region83: #{encoder_layer.1} parent=5 // pred_region
      %s477 = ssub.s32 %s22, 1
      %p478 = scmp.lt.s32.totalorder %s27, 1
      %s479 = scalar_select %p478, %s27, 1
      %s480 = smul.addr %s479, 2
      %s481 = smul.addr %s480, 8
      %s482 = scalar_lea.vmem %s0, %s481
      %p483 = pneg %p48
      %p484 = pneg %p45
      %p485 = scmp.lt.s32.totalorder %s27, 1
      %s486 = scalar_select %p485, %s27, 1
      %s487 = smul.addr %s486, 2
      %s488 = smul.addr %s487, 8
      %s489 = scalar_lea.vmem %s1, %s488
      %p490 = pneg %p74
      %p491 = pneg %p71
      %p492 = pneg %p95
      %p493 = pneg %p92
      %p494 = pneg %p116
      %p495 = pneg %p113
      %p496 = pneg %p137
      %p497 = pneg %p134
      %p498 = pneg %p158
      %p499 = pneg %p155
      %p500 = pneg %p179
      %p501 = pneg %p176
      %p502 = pneg %p200
      %p503 = pneg %p197
      %p504 = pneg %p221
      %p505 = pneg %p218
      %p506 = pneg %p242
      %p507 = pneg %p239
      %p508 = pneg %p263
      %p509 = pneg %p260
      %p510 = pneg %p284
      %p511 = pneg %p281
      %p512 = pneg %p305
      %p513 = pneg %p302
      %p514 = pneg %p326
      %p515 = pneg %p323
      %p516 = pneg %p347
      %p517 = pneg %p344
      %p518 = pneg %p368
      %p519 = pneg %p365
      %p520 = pneg %p394
      %p521 = pneg %p391
      %p522 = scmp.lt.s32.totalorder %s27, 1
      %s523 = scalar_select %p522, %s27, 1
      %s524 = smul.addr %s523, 2
      %s525 = smul.addr %s524, 8
      %s526 = scalar_lea.vmem %s16, %s525
      %p527 = scmp.lt.s32.totalorder %s27, 1
      %s528 = scalar_select %p527, %s27, 1
      %s529 = smul.addr %s528, 2
      %s530 = smul.addr %s529, 8
      %s531 = scalar_lea.vmem %s0, %s530
      %p532 = scmp.lt.s32.totalorder %s27, 1
      %s533 = scalar_select %p532, %s27, 1
      %s534 = smul.addr %s533, 2
      %s535 = smul.addr %s534, 8
      %s536 = scalar_lea.vmem %s1, %s535
      %p537 = scmp.lt.s32.totalorder %s27, 1
      %s538 = scalar_select %p537, %s27, 1
      %s539 = smul.addr %s538, 2
      %s540 = smul.addr %s539, 8
      %s541 = scalar_lea.vmem %s16, %s540
      %v543 = vld [vmem:[%s531] sm:$0xff]
      %v544 = vld [vmem:[%s531 + $0x8] sm:$0xff]
      %v545 = vld [vmem:[%s536] sm:$0xff]
      %v546 = vld [vmem:[%s536 + $0x8] sm:$0xff]
      %v547 = vadd.f32 %v543, %v545
      %v548 = vadd.f32 %v544, %v546
      %v549 = vpack.c.bf16 %v548, %v547
      %v550 = vld [vmem:[%s2] sm:$0xf]
      %v551 = vld [vmem:[%s2 + $0x4] sm:$0xf]
      %v552 = vld [vmem:[%s2 + $0x8] sm:$0xf]
      %v553 = vld [vmem:[%s2 + $0xc] sm:$0xf]
      %v554 = vld [vmem:[%s3] sm:$0x1]
      %v556 = vlaneseq
      %v557 = vshrl.u32 %v556, 7
      %v558 = vsub.s32 0, %v557
      %v559 = vrot.slane %v554, %v558
      %v565 = vunpack.c.l.b16 %v550
      %v566 = vunpack.c.l.b16 %v551
      %v567 = vunpack.c.l.b16 %v552
      %v568 = vunpack.c.l.b16 %v553
      %v569 = vpack.c.b16 %v566, %v565
      %v570 = vpack.c.b16 %v568, %v567
      %vm573 = vcmask 261120
      %v575 = vsel %vm573, %v549, 0
      %577 = vmatprep.subr.bf16.mxu0 0
      %578 = vmatpush1.bf16.msra.mxu0 0
      %579 = vmatprep.subr.bf16.mxu0 0
      %580 = vmatpush1.bf16.msra.mxu0 0
      %581 = vmatprep.subr.bf16.mxu0 0
      %582 = vmatpush1.bf16.msra.mxu0 0
      %583 = vmatprep.subr.bf16.mxu0 0
      %584 = vmatpush1.bf16.msra.mxu0 0
      %585 = vmatprep.subr.bf16.mxu0 0
      %586 = vmatpush1.bf16.msra.mxu0 0
      %587 = vmatprep.subr.bf16.mxu0 0
      %588 = vmatpush1.bf16.msra.mxu0 0
      %589 = vmatprep.subr.bf16.mxu0 0
      %590 = vmatpush1.bf16.msra.mxu0 %v570
      %591 = vmatprep.subr.bf16.mxu0 0
      %592 = vmatpush1.bf16.msra.mxu0 %v569
      %593 = vmatprep.subr.bf16.mxu0 0
      %594 = vmatpush2.bf16.msra.mxu0 0
      %595 = vmatprep.subr.bf16.mxu0 0
      %596 = vmatpush2.bf16.msra.mxu0 0
      %597 = vmatprep.subr.bf16.mxu0 0
      %598 = vmatpush2.bf16.msra.mxu0 0
      %599 = vmatprep.subr.bf16.mxu0 0
      %600 = vmatpush2.bf16.msra.mxu0 0
      %601 = vmatprep.subr.bf16.mxu0 0
      %602 = vmatpush2.bf16.msra.mxu0 0
      %603 = vmatprep.subr.bf16.mxu0 0
      %604 = vmatpush2.bf16.msra.mxu0 0
      %605 = vmatprep.subr.bf16.mxu0 0
      %606 = vmatpush2.bf16.msra.mxu0 0
      %607 = vmatprep.subr.bf16.mxu0 0
      %608 = vmatpush2.bf16.msra.mxu0 0
      %609 = vmatprep.mubr.bf16.mxu0 0
      %610 = vmatmul.mubr.bf16.gmra.mxu0 %v575
      %v611 = vpop.f32.mrf.mxu0
      %v612 = vadd.f32 %v559, %v611
      %v613 = vpop.f32.mrf.mxu0
      %v614 = vpop.f32.mrf.mxu0
      %v615 = vadd.f32 %v559, %v614
      %v616 = vpop.f32.mrf.mxu0
      %617 = vdwg.mxu0
      %v618 = vpack.c.bf16 %v544, %v543
      %v619 = vld [vmem:[%s4] sm:$0xf]
      %v620 = vld [vmem:[%s4 + $0x4] sm:$0xf]
      %v621 = vld [vmem:[%s4 + $0x8] sm:$0xf]
      %v622 = vld [vmem:[%s4 + $0xc] sm:$0xf]
      %v623 = vld [vmem:[%s5] sm:$0x1]
      %v625 = vlaneseq
      %v626 = vshrl.u32 %v625, 7
      %v627 = vsub.s32 0, %v626
      %v628 = vrot.slane %v623, %v627
      %v634 = vunpack.c.l.b16 %v619
      %v635 = vunpack.c.l.b16 %v620
      %v636 = vunpack.c.l.b16 %v621
      %v637 = vunpack.c.l.b16 %v622
      %v638 = vpack.c.b16 %v635, %v634
      %v639 = vpack.c.b16 %v637, %v636
      %v643 = vsel %vm573, %v618, 0
      %645 = vmatprep.subr.bf16.mxu0 0
      %646 = vmatpush1.bf16.msra.mxu0 0
      %647 = vmatprep.subr.bf16.mxu0 0
      %648 = vmatpush1.bf16.msra.mxu0 0
      %649 = vmatprep.subr.bf16.mxu0 0
      %650 = vmatpush1.bf16.msra.mxu0 0
      %651 = vmatprep.subr.bf16.mxu0 0
      %652 = vmatpush1.bf16.msra.mxu0 0
      %653 = vmatprep.subr.bf16.mxu0 0
      %654 = vmatpush1.bf16.msra.mxu0 0
      %655 = vmatprep.subr.bf16.mxu0 0
      %656 = vmatpush1.bf16.msra.mxu0 0
      %657 = vmatprep.subr.bf16.mxu0 0
      %658 = vmatpush1.bf16.msra.mxu0 %v639
      %659 = vmatprep.subr.bf16.mxu0 0
      %660 = vmatpush1.bf16.msra.mxu0 %v638
      %661 = vmatprep.subr.bf16.mxu0 0
      %662 = vmatpush2.bf16.msra.mxu0 0
      %663 = vmatprep.subr.bf16.mxu0 0
      %664 = vmatpush2.bf16.msra.mxu0 0
      %665 = vmatprep.subr.bf16.mxu0 0
      %666 = vmatpush2.bf16.msra.mxu0 0
      %667 = vmatprep.subr.bf16.mxu0 0
      %668 = vmatpush2.bf16.msra.mxu0 0
      %669 = vmatprep.subr.bf16.mxu0 0
      %670 = vmatpush2.bf16.msra.mxu0 0
      %671 = vmatprep.subr.bf16.mxu0 0
      %672 = vmatpush2.bf16.msra.mxu0 0
      %673 = vmatprep.subr.bf16.mxu0 0
      %674 = vmatpush2.bf16.msra.mxu0 0
      %675 = vmatprep.subr.bf16.mxu0 0
      %676 = vmatpush2.bf16.msra.mxu0 0
      %677 = vmatprep.mubr.bf16.mxu0 0
      %678 = vmatmul.mubr.bf16.gmra.mxu0 %v643
      %v679 = vpop.f32.mrf.mxu0
      %v680 = vadd.f32 %v628, %v679
      %v681 = vpop.f32.mrf.mxu0
      %v682 = vpop.f32.mrf.mxu0
      %v683 = vadd.f32 %v628, %v682
      %v684 = vpop.f32.mrf.mxu0
      %685 = vdwg.mxu0
      %v686 = vpack.c.bf16 %v615, %v612
      %v687 = vpack.c.bf16 %v683, %v680
      %689 = vrot.lane.b32.xlu0 %v686, 96
      %v690 = vpop.permute.xlu0 %689
      %vm691 = vcmask 64512
      %v693 = vsel %vm691, %v686, 0
      %v696 = vsel %vm691, %v690, 0
      %698 = vmatprep.subr.bf16.mxu0 0
      %699 = vmatpush1.bf16.xpose.msra.mxu0 0
      %700 = vmatprep.subr.bf16.mxu0 0
      %701 = vmatpush1.bf16.xpose.msra.mxu0 0
      %702 = vmatprep.subr.bf16.mxu0 0
      %703 = vmatpush1.bf16.xpose.msra.mxu0 0
      %704 = vmatprep.subr.bf16.mxu0 0
      %705 = vmatpush1.bf16.xpose.msra.mxu0 0
      %706 = vmatprep.subr.bf16.mxu0 0
      %707 = vmatpush1.bf16.xpose.msra.mxu0 0
      %708 = vmatprep.subr.bf16.mxu0 0
      %709 = vmatpush1.bf16.xpose.msra.mxu0 0
      %710 = vmatprep.subr.bf16.mxu0 0
      %711 = vmatpush1.bf16.xpose.msra.mxu0 0
      %712 = vmatprep.subr.bf16.mxu0 0
      %713 = vmatpush1.bf16.xpose.msra.mxu0 %v696
      %714 = vmatprep.subr.bf16.mxu0 0
      %715 = vmatpush2.bf16.xpose.msra.mxu0 0
      %716 = vmatprep.subr.bf16.mxu0 0
      %717 = vmatpush2.bf16.xpose.msra.mxu0 0
      %718 = vmatprep.subr.bf16.mxu0 0
      %719 = vmatpush2.bf16.xpose.msra.mxu0 0
      %720 = vmatprep.subr.bf16.mxu0 0
      %721 = vmatpush2.bf16.xpose.msra.mxu0 0
      %722 = vmatprep.subr.bf16.mxu0 0
      %723 = vmatpush2.bf16.xpose.msra.mxu0 0
      %724 = vmatprep.subr.bf16.mxu0 0
      %725 = vmatpush2.bf16.xpose.msra.mxu0 0
      %726 = vmatprep.subr.bf16.mxu0 0
      %727 = vmatpush2.bf16.xpose.msra.mxu0 0
      %728 = vmatprep.subr.bf16.mxu0 0
      %729 = vmatpush2.bf16.xpose.msra.mxu0 0
      %730 = vmatprep.mubr.bf16.mxu0 0
      %731 = vmatmul.mubr.bf16.gmra.mxu0 %v693
      %v732 = vpop.f32.mrf.mxu0
      %v733 = vadd.f32 0.0, %v732
      %v734 = vpop.f32.mrf.mxu0
      %v735 = vpop.f32.mrf.mxu0
      %v736 = vadd.f32 0.0, %v735
      %v737 = vpop.f32.mrf.mxu0
      %738 = vdwg.mxu0
      %vm739 = vcmask 130048
      %v740 = vsel %vm739, %v733, -inf
      %741 = vmax.xlane.f32.xlu0 %v740
      %v742 = vpop.xlane.xlu0 %741
      %v743 = vsel %vm739, %v736, -inf
      %744 = vmax.xlane.f32.xlu0 %v743
      %v745 = vpop.xlane.xlu0 %744
      %v746 = vsub.f32 %v733, %v742
      %v747 = vsub.f32 %v736, %v745
      %v748 = vmul.f32 %v746, 1.442695
      %v749 = vpow.pop %v748
      %v750 = vmul.f32 %v747, 1.442695
      %v751 = vpow.pop %v750
      %v752 = vsel %vm739, %v749, 0.0
      %753 = vadd.xlane.f32.xlu0 %v752
      %v754 = vpop.xlane.xlu0 %753
      %v755 = vsel %vm739, %v751, 0.0
      %756 = vadd.xlane.f32.xlu0 %v755
      %v757 = vpop.xlane.xlu0 %756
      %v758 = vrcp.pop %v754
      %v759 = vrcp.pop %v757
      %v760 = vmul.f32 %v749, %v758
      %v761 = vmul.f32 %v751, %v759
      %v762 = vpack.c.bf16 %v761, %v760
      %v764 = vsel %vm739, %v762, 0
      %766 = vmatprep.subr.bf16.mxu0 0
      %767 = vmatpush1.bf16.msra.mxu0 0
      %768 = vmatprep.subr.bf16.mxu0 0
      %769 = vmatpush1.bf16.msra.mxu0 0
      %770 = vmatprep.subr.bf16.mxu0 0
      %771 = vmatpush1.bf16.msra.mxu0 0
      %772 = vmatprep.subr.bf16.mxu0 0
      %773 = vmatpush1.bf16.msra.mxu0 0
      %774 = vmatprep.subr.bf16.mxu0 0
      %775 = vmatpush1.bf16.msra.mxu0 0
      %776 = vmatprep.subr.bf16.mxu0 0
      %777 = vmatpush1.bf16.msra.mxu0 0
      %778 = vmatprep.subr.bf16.mxu0 0
      %779 = vmatpush1.bf16.msra.mxu0 0
      %780 = vmatprep.subr.bf16.mxu0 0
      %781 = vmatpush1.bf16.msra.mxu0 %v687
      %782 = vmatprep.subr.bf16.mxu0 0
      %783 = vmatpush2.bf16.msra.mxu0 0
      %784 = vmatprep.subr.bf16.mxu0 0
      %785 = vmatpush2.bf16.msra.mxu0 0
      %786 = vmatprep.subr.bf16.mxu0 0
      %787 = vmatpush2.bf16.msra.mxu0 0
      %788 = vmatprep.subr.bf16.mxu0 0
      %789 = vmatpush2.bf16.msra.mxu0 0
      %790 = vmatprep.subr.bf16.mxu0 0
      %791 = vmatpush2.bf16.msra.mxu0 0
      %792 = vmatprep.subr.bf16.mxu0 0
      %793 = vmatpush2.bf16.msra.mxu0 0
      %794 = vmatprep.subr.bf16.mxu0 0
      %795 = vmatpush2.bf16.msra.mxu0 0
      %796 = vmatprep.subr.bf16.mxu0 0
      %797 = vmatpush2.bf16.msra.mxu0 0
      %798 = vmatprep.mubr.bf16.mxu0 0
      %799 = vmatmul.mubr.bf16.gmra.mxu0 %v764
      %v800 = vpop.f32.mrf.mxu0
      %v801 = vadd.f32 0.0, %v800
      %v802 = vpop.f32.mrf.mxu0
      %v803 = vpop.f32.mrf.mxu0
      %v804 = vadd.f32 0.0, %v803
      %v805 = vpop.f32.mrf.mxu0
      %806 = vdwg.mxu0
      %v807 = vpack.c.bf16 %v804, %v801
      %v808 = vld [vmem:[%s6] sm:$0xf]
      %809 = vrot.lane.b32.xlu0 %v686, 120
      %v810 = vpop.permute.xlu0 %809
      %811 = vrot.lane.b32.xlu0 %v686, 88
      %v812 = vpop.permute.xlu0 %811
      %v814 = vsel %vm691, %v810, 0
      %v817 = vsel %vm691, %v812, 0
      %819 = vmatprep.subr.bf16.mxu0 0
      %820 = vmatpush1.bf16.xpose.msra.mxu0 0
      %821 = vmatprep.subr.bf16.mxu0 0
      %822 = vmatpush1.bf16.xpose.msra.mxu0 0
      %823 = vmatprep.subr.bf16.mxu0 0
      %824 = vmatpush1.bf16.xpose.msra.mxu0 0
      %825 = vmatprep.subr.bf16.mxu0 0
      %826 = vmatpush1.bf16.xpose.msra.mxu0 0
      %827 = vmatprep.subr.bf16.mxu0 0
      %828 = vmatpush1.bf16.xpose.msra.mxu0 0
      %829 = vmatprep.subr.bf16.mxu0 0
      %830 = vmatpush1.bf16.xpose.msra.mxu0 0
      %831 = vmatprep.subr.bf16.mxu0 0
      %832 = vmatpush1.bf16.xpose.msra.mxu0 0
      %833 = vmatprep.subr.bf16.mxu0 0
      %834 = vmatpush1.bf16.xpose.msra.mxu0 %v817
      %835 = vmatprep.subr.bf16.mxu0 0
      %836 = vmatpush2.bf16.xpose.msra.mxu0 0
      %837 = vmatprep.subr.bf16.mxu0 0
      %838 = vmatpush2.bf16.xpose.msra.mxu0 0
      %839 = vmatprep.subr.bf16.mxu0 0
      %840 = vmatpush2.bf16.xpose.msra.mxu0 0
      %841 = vmatprep.subr.bf16.mxu0 0
      %842 = vmatpush2.bf16.xpose.msra.mxu0 0
      %843 = vmatprep.subr.bf16.mxu0 0
      %844 = vmatpush2.bf16.xpose.msra.mxu0 0
      %845 = vmatprep.subr.bf16.mxu0 0
      %846 = vmatpush2.bf16.xpose.msra.mxu0 0
      %847 = vmatprep.subr.bf16.mxu0 0
      %848 = vmatpush2.bf16.xpose.msra.mxu0 0
      %849 = vmatprep.subr.bf16.mxu0 0
      %850 = vmatpush2.bf16.xpose.msra.mxu0 0
      %851 = vmatprep.mubr.bf16.mxu0 0
      %852 = vmatmul.mubr.bf16.gmra.mxu0 %v814
      %v853 = vpop.f32.mrf.mxu0
      %v854 = vadd.f32 0.0, %v853
      %v855 = vpop.f32.mrf.mxu0
      %v856 = vpop.f32.mrf.mxu0
      %v857 = vadd.f32 0.0, %v856
      %v858 = vpop.f32.mrf.mxu0
      %859 = vdwg.mxu0
      %v860 = vsel %vm739, %v854, -inf
      %861 = vmax.xlane.f32.xlu0 %v860
      %v862 = vpop.xlane.xlu0 %861
      %v863 = vsel %vm739, %v857, -inf
      %864 = vmax.xlane.f32.xlu0 %v863
      %v865 = vpop.xlane.xlu0 %864
      %v866 = vsub.f32 %v854, %v862
      %v867 = vsub.f32 %v857, %v865
      %v868 = vmul.f32 %v866, 1.442695
      %v869 = vpow.pop %v868
      %v870 = vmul.f32 %v867, 1.442695
      %v871 = vpow.pop %v870
      %v872 = vsel %vm739, %v869, 0.0
      %873 = vadd.xlane.f32.xlu0 %v872
      %v874 = vpop.xlane.xlu0 %873
      %v875 = vsel %vm739, %v871, 0.0
      %876 = vadd.xlane.f32.xlu0 %v875
      %v877 = vpop.xlane.xlu0 %876
      %v878 = vrcp.pop %v874
      %v879 = vrcp.pop %v877
      %v880 = vmul.f32 %v869, %v878
      %v881 = vmul.f32 %v871, %v879
      %v882 = vpack.c.bf16 %v881, %v880
      %884 = vrot.lane.b32.xlu0 %v687, 120
      %v885 = vpop.permute.xlu0 %884
      %v888 = vsel %vm739, %v882, 0
      %890 = vmatprep.subr.bf16.mxu0 0
      %891 = vmatpush1.bf16.msra.mxu0 0
      %892 = vmatprep.subr.bf16.mxu0 0
      %893 = vmatpush1.bf16.msra.mxu0 0
      %894 = vmatprep.subr.bf16.mxu0 0
      %895 = vmatpush1.bf16.msra.mxu0 0
      %896 = vmatprep.subr.bf16.mxu0 0
      %897 = vmatpush1.bf16.msra.mxu0 0
      %898 = vmatprep.subr.bf16.mxu0 0
      %899 = vmatpush1.bf16.msra.mxu0 0
      %900 = vmatprep.subr.bf16.mxu0 0
      %901 = vmatpush1.bf16.msra.mxu0 0
      %902 = vmatprep.subr.bf16.mxu0 0
      %903 = vmatpush1.bf16.msra.mxu0 0
      %904 = vmatprep.subr.bf16.mxu0 0
      %905 = vmatpush1.bf16.msra.mxu0 %v885
      %906 = vmatprep.subr.bf16.mxu0 0
      %907 = vmatpush2.bf16.msra.mxu0 0
      %908 = vmatprep.subr.bf16.mxu0 0
      %909 = vmatpush2.bf16.msra.mxu0 0
      %910 = vmatprep.subr.bf16.mxu0 0
      %911 = vmatpush2.bf16.msra.mxu0 0
      %912 = vmatprep.subr.bf16.mxu0 0
      %913 = vmatpush2.bf16.msra.mxu0 0
      %914 = vmatprep.subr.bf16.mxu0 0
      %915 = vmatpush2.bf16.msra.mxu0 0
      %916 = vmatprep.subr.bf16.mxu0 0
      %917 = vmatpush2.bf16.msra.mxu0 0
      %918 = vmatprep.subr.bf16.mxu0 0
      %919 = vmatpush2.bf16.msra.mxu0 0
      %920 = vmatprep.subr.bf16.mxu0 0
      %921 = vmatpush2.bf16.msra.mxu0 0
      %922 = vmatprep.mubr.bf16.mxu0 0
      %923 = vmatmul.mubr.bf16.gmra.mxu0 %v888
      %v924 = vpop.f32.mrf.mxu0
      %v925 = vadd.f32 0.0, %v924
      %v926 = vpop.f32.mrf.mxu0
      %v927 = vpop.f32.mrf.mxu0
      %v928 = vadd.f32 0.0, %v927
      %v929 = vpop.f32.mrf.mxu0
      %930 = vdwg.mxu0
      %v931 = vpack.c.bf16 %v928, %v925
      %s932 = scalar_lea.vmem %s6, 4
      %v933 = vld [vmem:[%s932] sm:$0xf]
      %v935 = vsel %vm691, %v931, 0
      %vm937 = vcmask 1043456
      %v939 = vsel %vm937, %v933, 0
      %941 = vmatprep.subr.bf16.mxu0 0
      %942 = vmatpush1.bf16.msra.mxu0 0
      %943 = vmatprep.subr.bf16.mxu0 0
      %944 = vmatpush1.bf16.msra.mxu0 0
      %945 = vmatprep.subr.bf16.mxu0 0
      %946 = vmatpush1.bf16.msra.mxu0 0
      %947 = vmatprep.subr.bf16.mxu0 0
      %948 = vmatpush1.bf16.msra.mxu0 0
      %949 = vmatprep.subr.bf16.mxu0 0
      %950 = vmatpush1.bf16.msra.mxu0 0
      %951 = vmatprep.subr.bf16.mxu0 0
      %952 = vmatpush1.bf16.msra.mxu0 0
      %953 = vmatprep.subr.bf16.mxu0 0
      %954 = vmatpush1.bf16.msra.mxu0 0
      %955 = vmatprep.subr.bf16.mxu0 0
      %956 = vmatpush1.bf16.msra.mxu0 %v939
      %957 = vmatprep.subr.bf16.mxu0 0
      %958 = vmatpush2.bf16.msra.mxu0 0
      %959 = vmatprep.subr.bf16.mxu0 0
      %960 = vmatpush2.bf16.msra.mxu0 0
      %961 = vmatprep.subr.bf16.mxu0 0
      %962 = vmatpush2.bf16.msra.mxu0 0
      %963 = vmatprep.subr.bf16.mxu0 0
      %964 = vmatpush2.bf16.msra.mxu0 0
      %965 = vmatprep.subr.bf16.mxu0 0
      %966 = vmatpush2.bf16.msra.mxu0 0
      %967 = vmatprep.subr.bf16.mxu0 0
      %968 = vmatpush2.bf16.msra.mxu0 0
      %969 = vmatprep.subr.bf16.mxu0 0
      %970 = vmatpush2.bf16.msra.mxu0 0
      %971 = vmatprep.subr.bf16.mxu0 0
      %972 = vmatpush2.bf16.msra.mxu0 0
      %973 = vmatprep.mubr.bf16.mxu0 0
      %974 = vmatmul.mubr.bf16.gmra.mxu0 %v935
      %v975 = vpop.f32.mrf.mxu0
      %v976 = vadd.f32 0.0, %v975
      %v977 = vpop.f32.mrf.mxu0
      %v978 = vpop.f32.mrf.mxu0
      %v979 = vadd.f32 0.0, %v978
      %v980 = vpop.f32.mrf.mxu0
      %981 = vdwg.mxu0
      %v983 = vsel %vm691, %v807, 0
      %v986 = vsel %vm937, %v808, 0
      %988 = vmatprep.subr.bf16.mxu0 0
      %989 = vmatpush1.bf16.msra.mxu0 0
      %990 = vmatprep.subr.bf16.mxu0 0
      %991 = vmatpush1.bf16.msra.mxu0 0
      %992 = vmatprep.subr.bf16.mxu0 0
      %993 = vmatpush1.bf16.msra.mxu0 0
      %994 = vmatprep.subr.bf16.mxu0 0
      %995 = vmatpush1.bf16.msra.mxu0 0
      %996 = vmatprep.subr.bf16.mxu0 0
      %997 = vmatpush1.bf16.msra.mxu0 0
      %998 = vmatprep.subr.bf16.mxu0 0
      %999 = vmatpush1.bf16.msra.mxu0 0
      %1000 = vmatprep.subr.bf16.mxu0 0
      %1001 = vmatpush1.bf16.msra.mxu0 0
      %1002 = vmatprep.subr.bf16.mxu0 0
      %1003 = vmatpush1.bf16.msra.mxu0 %v986
      %1004 = vmatprep.subr.bf16.mxu0 0
      %1005 = vmatpush2.bf16.msra.mxu0 0
      %1006 = vmatprep.subr.bf16.mxu0 0
      %1007 = vmatpush2.bf16.msra.mxu0 0
      %1008 = vmatprep.subr.bf16.mxu0 0
      %1009 = vmatpush2.bf16.msra.mxu0 0
      %1010 = vmatprep.subr.bf16.mxu0 0
      %1011 = vmatpush2.bf16.msra.mxu0 0
      %1012 = vmatprep.subr.bf16.mxu0 0
      %1013 = vmatpush2.bf16.msra.mxu0 0
      %1014 = vmatprep.subr.bf16.mxu0 0
      %1015 = vmatpush2.bf16.msra.mxu0 0
      %1016 = vmatprep.subr.bf16.mxu0 0
      %1017 = vmatpush2.bf16.msra.mxu0 0
      %1018 = vmatprep.subr.bf16.mxu0 0
      %1019 = vmatpush2.bf16.msra.mxu0 0
      %1020 = vmatprep.mubr.bf16.mxu0 0
      %1021 = vmatmul.mubr.bf16.gmra.mxu0 %v983
      %v1022 = vpop.f32.mrf.mxu0
      %v1023 = vadd.f32 %v976, %v1022
      %v1024 = vpop.f32.mrf.mxu0
      %v1025 = vpop.f32.mrf.mxu0
      %v1026 = vadd.f32 %v979, %v1025
      %v1027 = vpop.f32.mrf.mxu0
      %1028 = vdwg.mxu0
      %1029 = vrot.lane.b32.xlu0 %v686, 112
      %v1030 = vpop.permute.xlu0 %1029
      %1031 = vrot.lane.b32.xlu0 %v686, 80
      %v1032 = vpop.permute.xlu0 %1031
      %v1034 = vsel %vm691, %v1030, 0
      %v1037 = vsel %vm691, %v1032, 0
      %1039 = vmatprep.subr.bf16.mxu0 0
      %1040 = vmatpush1.bf16.xpose.msra.mxu0 0
      %1041 = vmatprep.subr.bf16.mxu0 0
      %1042 = vmatpush1.bf16.xpose.msra.mxu0 0
      %1043 = vmatprep.subr.bf16.mxu0 0
      %1044 = vmatpush1.bf16.xpose.msra.mxu0 0
      %1045 = vmatprep.subr.bf16.mxu0 0
      %1046 = vmatpush1.bf16.xpose.msra.mxu0 0
      %1047 = vmatprep.subr.bf16.mxu0 0
      %1048 = vmatpush1.bf16.xpose.msra.mxu0 0
      %1049 = vmatprep.subr.bf16.mxu0 0
      %1050 = vmatpush1.bf16.xpose.msra.mxu0 0
      %1051 = vmatprep.subr.bf16.mxu0 0
      %1052 = vmatpush1.bf16.xpose.msra.mxu0 0
      %1053 = vmatprep.subr.bf16.mxu0 0
      %1054 = vmatpush1.bf16.xpose.msra.mxu0 %v1037
      %1055 = vmatprep.subr.bf16.mxu0 0
      %1056 = vmatpush2.bf16.xpose.msra.mxu0 0
      %1057 = vmatprep.subr.bf16.mxu0 0
      %1058 = vmatpush2.bf16.xpose.msra.mxu0 0
      %1059 = vmatprep.subr.bf16.mxu0 0
      %1060 = vmatpush2.bf16.xpose.msra.mxu0 0
      %1061 = vmatprep.subr.bf16.mxu0 0
      %1062 = vmatpush2.bf16.xpose.msra.mxu0 0
      %1063 = vmatprep.subr.bf16.mxu0 0
      %1064 = vmatpush2.bf16.xpose.msra.mxu0 0
      %1065 = vmatprep.subr.bf16.mxu0 0
      %1066 = vmatpush2.bf16.xpose.msra.mxu0 0
      %1067 = vmatprep.subr.bf16.mxu0 0
      %1068 = vmatpush2.bf16.xpose.msra.mxu0 0
      %1069 = vmatprep.subr.bf16.mxu0 0
      %1070 = vmatpush2.bf16.xpose.msra.mxu0 0
      %1071 = vmatprep.mubr.bf16.mxu0 0
      %1072 = vmatmul.mubr.bf16.gmra.mxu0 %v1034
      %v1073 = vpop.f32.mrf.mxu0
      %v1074 = vadd.f32 0.0, %v1073
      %v1075 = vpop.f32.mrf.mxu0
      %v1076 = vpop.f32.mrf.mxu0
      %v1077 = vadd.f32 0.0, %v1076
      %v1078 = vpop.f32.mrf.mxu0
      %1079 = vdwg.mxu0
      %v1080 = vsel %vm739, %v1074, -inf
      %1081 = vmax.xlane.f32.xlu0 %v1080
      %v1082 = vpop.xlane.xlu0 %1081
      %v1083 = vsel %vm739, %v1077, -inf
      %1084 = vmax.xlane.f32.xlu0 %v1083
      %v1085 = vpop.xlane.xlu0 %1084
      %v1086 = vsub.f32 %v1074, %v1082
      %v1087 = vsub.f32 %v1077, %v1085
      %v1088 = vmul.f32 %v1086, 1.442695
      %v1089 = vpow.pop %v1088
      %v1090 = vmul.f32 %v1087, 1.442695
      %v1091 = vpow.pop %v1090
      %v1092 = vsel %vm739, %v1089, 0.0
      %1093 = vadd.xlane.f32.xlu0 %v1092
      %v1094 = vpop.xlane.xlu0 %1093
      %v1095 = vsel %vm739, %v1091, 0.0
      %1096 = vadd.xlane.f32.xlu0 %v1095
      %v1097 = vpop.xlane.xlu0 %1096
      %v1098 = vrcp.pop %v1094
      %v1099 = vrcp.pop %v1097
      %v1100 = vmul.f32 %v1089, %v1098
      %v1101 = vmul.f32 %v1091, %v1099
      %v1102 = vpack.c.bf16 %v1101, %v1100
      %1103 = vrot.lane.b32.xlu0 %v687, 112
      %v1104 = vpop.permute.xlu0 %1103
      %v1107 = vsel %vm739, %v1102, 0
      %1109 = vmatprep.subr.bf16.mxu0 0
      %1110 = vmatpush1.bf16.msra.mxu0 0
      %1111 = vmatprep.subr.bf16.mxu0 0
      %1112 = vmatpush1.bf16.msra.mxu0 0
      %1113 = vmatprep.subr.bf16.mxu0 0
      %1114 = vmatpush1.bf16.msra.mxu0 0
      %1115 = vmatprep.subr.bf16.mxu0 0
      %1116 = vmatpush1.bf16.msra.mxu0 0
      %1117 = vmatprep.subr.bf16.mxu0 0
      %1118 = vmatpush1.bf16.msra.mxu0 0
      %1119 = vmatprep.subr.bf16.mxu0 0
      %1120 = vmatpush1.bf16.msra.mxu0 0
      %1121 = vmatprep.subr.bf16.mxu0 0
      %1122 = vmatpush1.bf16.msra.mxu0 0
      %1123 = vmatprep.subr.bf16.mxu0 0
      %1124 = vmatpush1.bf16.msra.mxu0 %v1104
      %1125 = vmatprep.subr.bf16.mxu0 0
      %1126 = vmatpush2.bf16.msra.mxu0 0
      %1127 = vmatprep.subr.bf16.mxu0 0
      %1128 = vmatpush2.bf16.msra.mxu0 0
      %1129 = vmatprep.subr.bf16.mxu0 0
      %1130 = vmatpush2.bf16.msra.mxu0 0
      %1131 = vmatprep.subr.bf16.mxu0 0
      %1132 = vmatpush2.bf16.msra.mxu0 0
      %1133 = vmatprep.subr.bf16.mxu0 0
      %1134 = vmatpush2.bf16.msra.mxu0 0
      %1135 = vmatprep.subr.bf16.mxu0 0
      %1136 = vmatpush2.bf16.msra.mxu0 0
      %1137 = vmatprep.subr.bf16.mxu0 0
      %1138 = vmatpush2.bf16.msra.mxu0 0
      %1139 = vmatprep.subr.bf16.mxu0 0
      %1140 = vmatpush2.bf16.msra.mxu0 0
      %1141 = vmatprep.mubr.bf16.mxu0 0
      %1142 = vmatmul.mubr.bf16.gmra.mxu0 %v1107
      %v1143 = vpop.f32.mrf.mxu0
      %v1144 = vadd.f32 0.0, %v1143
      %v1145 = vpop.f32.mrf.mxu0
      %v1146 = vpop.f32.mrf.mxu0
      %v1147 = vadd.f32 0.0, %v1146
      %v1148 = vpop.f32.mrf.mxu0
      %1149 = vdwg.mxu0
      %v1150 = vpack.c.bf16 %v1147, %v1144
      %s1151 = scalar_lea.vmem %s6, 8
      %v1152 = vld [vmem:[%s1151] sm:$0xf]
      %v1154 = vsel %vm691, %v1150, 0
      %v1157 = vsel %vm937, %v1152, 0
      %1159 = vmatprep.subr.bf16.mxu0 0
      %1160 = vmatpush1.bf16.msra.mxu0 0
      %1161 = vmatprep.subr.bf16.mxu0 0
      %1162 = vmatpush1.bf16.msra.mxu0 0
      %1163 = vmatprep.subr.bf16.mxu0 0
      %1164 = vmatpush1.bf16.msra.mxu0 0
      %1165 = vmatprep.subr.bf16.mxu0 0
      %1166 = vmatpush1.bf16.msra.mxu0 0
      %1167 = vmatprep.subr.bf16.mxu0 0
      %1168 = vmatpush1.bf16.msra.mxu0 0
      %1169 = vmatprep.subr.bf16.mxu0 0
      %1170 = vmatpush1.bf16.msra.mxu0 0
      %1171 = vmatprep.subr.bf16.mxu0 0
      %1172 = vmatpush1.bf16.msra.mxu0 0
      %1173 = vmatprep.subr.bf16.mxu0 0
      %1174 = vmatpush1.bf16.msra.mxu0 %v1157
      %1175 = vmatprep.subr.bf16.mxu0 0
      %1176 = vmatpush2.bf16.msra.mxu0 0
      %1177 = vmatprep.subr.bf16.mxu0 0
      %1178 = vmatpush2.bf16.msra.mxu0 0
      %1179 = vmatprep.subr.bf16.mxu0 0
      %1180 = vmatpush2.bf16.msra.mxu0 0
      %1181 = vmatprep.subr.bf16.mxu0 0
      %1182 = vmatpush2.bf16.msra.mxu0 0
      %1183 = vmatprep.subr.bf16.mxu0 0
      %1184 = vmatpush2.bf16.msra.mxu0 0
      %1185 = vmatprep.subr.bf16.mxu0 0
      %1186 = vmatpush2.bf16.msra.mxu0 0
      %1187 = vmatprep.subr.bf16.mxu0 0
      %1188 = vmatpush2.bf16.msra.mxu0 0
      %1189 = vmatprep.subr.bf16.mxu0 0
      %1190 = vmatpush2.bf16.msra.mxu0 0
      %1191 = vmatprep.mubr.bf16.mxu0 0
      %1192 = vmatmul.mubr.bf16.gmra.mxu0 %v1154
      %v1193 = vpop.f32.mrf.mxu0
      %v1194 = vadd.f32 0.0, %v1193
      %v1195 = vpop.f32.mrf.mxu0
      %v1196 = vpop.f32.mrf.mxu0
      %v1197 = vadd.f32 0.0, %v1196
      %v1198 = vpop.f32.mrf.mxu0
      %1199 = vdwg.mxu0
      %v1200 = vadd.f32 %v1023, %v1194
      %v1201 = vadd.f32 %v1026, %v1197
      %1202 = vrot.lane.b32.xlu0 %v686, 104
      %v1203 = vpop.permute.xlu0 %1202
      %1204 = vrot.lane.b32.xlu0 %v686, 72
      %v1205 = vpop.permute.xlu0 %1204
      %v1207 = vsel %vm691, %v1203, 0
      %v1210 = vsel %vm691, %v1205, 0
      %1212 = vmatprep.subr.bf16.mxu0 0
      %1213 = vmatpush1.bf16.xpose.msra.mxu0 0
      %1214 = vmatprep.subr.bf16.mxu0 0
      %1215 = vmatpush1.bf16.xpose.msra.mxu0 0
      %1216 = vmatprep.subr.bf16.mxu0 0
      %1217 = vmatpush1.bf16.xpose.msra.mxu0 0
      %1218 = vmatprep.subr.bf16.mxu0 0
      %1219 = vmatpush1.bf16.xpose.msra.mxu0 0
      %1220 = vmatprep.subr.bf16.mxu0 0
      %1221 = vmatpush1.bf16.xpose.msra.mxu0 0
      %1222 = vmatprep.subr.bf16.mxu0 0
      %1223 = vmatpush1.bf16.xpose.msra.mxu0 0
      %1224 = vmatprep.subr.bf16.mxu0 0
      %1225 = vmatpush1.bf16.xpose.msra.mxu0 0
      %1226 = vmatprep.subr.bf16.mxu0 0
      %1227 = vmatpush1.bf16.xpose.msra.mxu0 %v1210
      %1228 = vmatprep.subr.bf16.mxu0 0
      %1229 = vmatpush2.bf16.xpose.msra.mxu0 0
      %1230 = vmatprep.subr.bf16.mxu0 0
      %1231 = vmatpush2.bf16.xpose.msra.mxu0 0
      %1232 = vmatprep.subr.bf16.mxu0 0
      %1233 = vmatpush2.bf16.xpose.msra.mxu0 0
      %1234 = vmatprep.subr.bf16.mxu0 0
      %1235 = vmatpush2.bf16.xpose.msra.mxu0 0
      %1236 = vmatprep.subr.bf16.mxu0 0
      %1237 = vmatpush2.bf16.xpose.msra.mxu0 0
      %1238 = vmatprep.subr.bf16.mxu0 0
      %1239 = vmatpush2.bf16.xpose.msra.mxu0 0
      %1240 = vmatprep.subr.bf16.mxu0 0
      %1241 = vmatpush2.bf16.xpose.msra.mxu0 0
      %1242 = vmatprep.subr.bf16.mxu0 0
      %1243 = vmatpush2.bf16.xpose.msra.mxu0 0
      %1244 = vmatprep.mubr.bf16.mxu0 0
      %1245 = vmatmul.mubr.bf16.gmra.mxu0 %v1207
      %v1246 = vpop.f32.mrf.mxu0
      %v1247 = vadd.f32 0.0, %v1246
      %v1248 = vpop.f32.mrf.mxu0
      %v1249 = vpop.f32.mrf.mxu0
      %v1250 = vadd.f32 0.0, %v1249
      %v1251 = vpop.f32.mrf.mxu0
      %1252 = vdwg.mxu0
      %v1253 = vsel %vm739, %v1247, -inf
      %1254 = vmax.xlane.f32.xlu0 %v1253
      %v1255 = vpop.xlane.xlu0 %1254
      %v1256 = vsel %vm739, %v1250, -inf
      %1257 = vmax.xlane.f32.xlu0 %v1256
      %v1258 = vpop.xlane.xlu0 %1257
      %v1259 = vsub.f32 %v1247, %v1255
      %v1260 = vsub.f32 %v1250, %v1258
      %v1261 = vmul.f32 %v1259, 1.442695
      %v1262 = vpow.pop %v1261
      %v1263 = vmul.f32 %v1260, 1.442695
      %v1264 = vpow.pop %v1263
      %v1265 = vsel %vm739, %v1262, 0.0
      %1266 = vadd.xlane.f32.xlu0 %v1265
      %v1267 = vpop.xlane.xlu0 %1266
      %v1268 = vsel %vm739, %v1264, 0.0
      %1269 = vadd.xlane.f32.xlu0 %v1268
      %v1270 = vpop.xlane.xlu0 %1269
      %v1271 = vrcp.pop %v1267
      %v1272 = vrcp.pop %v1270
      %v1273 = vmul.f32 %v1262, %v1271
      %v1274 = vmul.f32 %v1264, %v1272
      %v1275 = vpack.c.bf16 %v1274, %v1273
      %1276 = vrot.lane.b32.xlu0 %v687, 104
      %v1277 = vpop.permute.xlu0 %1276
      %v1280 = vsel %vm739, %v1275, 0
      %1282 = vmatprep.subr.bf16.mxu0 0
      %1283 = vmatpush1.bf16.msra.mxu0 0
      %1284 = vmatprep.subr.bf16.mxu0 0
      %1285 = vmatpush1.bf16.msra.mxu0 0
      %1286 = vmatprep.subr.bf16.mxu0 0
      %1287 = vmatpush1.bf16.msra.mxu0 0
      %1288 = vmatprep.subr.bf16.mxu0 0
      %1289 = vmatpush1.bf16.msra.mxu0 0
      %1290 = vmatprep.subr.bf16.mxu0 0
      %1291 = vmatpush1.bf16.msra.mxu0 0
      %1292 = vmatprep.subr.bf16.mxu0 0
      %1293 = vmatpush1.bf16.msra.mxu0 0
      %1294 = vmatprep.subr.bf16.mxu0 0
      %1295 = vmatpush1.bf16.msra.mxu0 0
      %1296 = vmatprep.subr.bf16.mxu0 0
      %1297 = vmatpush1.bf16.msra.mxu0 %v1277
      %1298 = vmatprep.subr.bf16.mxu0 0
      %1299 = vmatpush2.bf16.msra.mxu0 0
      %1300 = vmatprep.subr.bf16.mxu0 0
      %1301 = vmatpush2.bf16.msra.mxu0 0
      %1302 = vmatprep.subr.bf16.mxu0 0
      %1303 = vmatpush2.bf16.msra.mxu0 0
      %1304 = vmatprep.subr.bf16.mxu0 0
      %1305 = vmatpush2.bf16.msra.mxu0 0
      %1306 = vmatprep.subr.bf16.mxu0 0
      %1307 = vmatpush2.bf16.msra.mxu0 0
      %1308 = vmatprep.subr.bf16.mxu0 0
      %1309 = vmatpush2.bf16.msra.mxu0 0
      %1310 = vmatprep.subr.bf16.mxu0 0
      %1311 = vmatpush2.bf16.msra.mxu0 0
      %1312 = vmatprep.subr.bf16.mxu0 0
      %1313 = vmatpush2.bf16.msra.mxu0 0
      %1314 = vmatprep.mubr.bf16.mxu0 0
      %1315 = vmatmul.mubr.bf16.gmra.mxu0 %v1280
      %v1316 = vpop.f32.mrf.mxu0
      %v1317 = vadd.f32 0.0, %v1316
      %v1318 = vpop.f32.mrf.mxu0
      %v1319 = vpop.f32.mrf.mxu0
      %v1320 = vadd.f32 0.0, %v1319
      %v1321 = vpop.f32.mrf.mxu0
      %1322 = vdwg.mxu0
      %v1323 = vpack.c.bf16 %v1320, %v1317
      %s1324 = scalar_lea.vmem %s6, 12
      %v1325 = vld [vmem:[%s1324] sm:$0xf]
      %v1327 = vsel %vm691, %v1323, 0
      %v1330 = vsel %vm937, %v1325, 0
      %1332 = vmatprep.subr.bf16.mxu0 0
      %1333 = vmatpush1.bf16.msra.mxu0 0
      %1334 = vmatprep.subr.bf16.mxu0 0
      %1335 = vmatpush1.bf16.msra.mxu0 0
      %1336 = vmatprep.subr.bf16.mxu0 0
      %1337 = vmatpush1.bf16.msra.mxu0 0
      %1338 = vmatprep.subr.bf16.mxu0 0
      %1339 = vmatpush1.bf16.msra.mxu0 0
      %1340 = vmatprep.subr.bf16.mxu0 0
      %1341 = vmatpush1.bf16.msra.mxu0 0
      %1342 = vmatprep.subr.bf16.mxu0 0
      %1343 = vmatpush1.bf16.msra.mxu0 0
      %1344 = vmatprep.subr.bf16.mxu0 0
      %1345 = vmatpush1.bf16.msra.mxu0 0
      %1346 = vmatprep.subr.bf16.mxu0 0
      %1347 = vmatpush1.bf16.msra.mxu0 %v1330
      %1348 = vmatprep.subr.bf16.mxu0 0
      %1349 = vmatpush2.bf16.msra.mxu0 0
      %1350 = vmatprep.subr.bf16.mxu0 0
      %1351 = vmatpush2.bf16.msra.mxu0 0
      %1352 = vmatprep.subr.bf16.mxu0 0
      %1353 = vmatpush2.bf16.msra.mxu0 0
      %1354 = vmatprep.subr.bf16.mxu0 0
      %1355 = vmatpush2.bf16.msra.mxu0 0
      %1356 = vmatprep.subr.bf16.mxu0 0
      %1357 = vmatpush2.bf16.msra.mxu0 0
      %1358 = vmatprep.subr.bf16.mxu0 0
      %1359 = vmatpush2.bf16.msra.mxu0 0
      %1360 = vmatprep.subr.bf16.mxu0 0
      %1361 = vmatpush2.bf16.msra.mxu0 0
      %1362 = vmatprep.subr.bf16.mxu0 0
      %1363 = vmatpush2.bf16.msra.mxu0 0
      %1364 = vmatprep.mubr.bf16.mxu0 0
      %1365 = vmatmul.mubr.bf16.gmra.mxu0 %v1327
      %v1366 = vpop.f32.mrf.mxu0
      %v1367 = vadd.f32 0.0, %v1366
      %v1368 = vpop.f32.mrf.mxu0
      %v1369 = vpop.f32.mrf.mxu0
      %v1370 = vadd.f32 0.0, %v1369
      %v1371 = vpop.f32.mrf.mxu0
      %1372 = vdwg.mxu0
      %v1373 = vadd.f32 %v1200, %v1367
      %v1374 = vadd.f32 %v1201, %v1370
      %v1375 = vld [vmem:[%s7] sm:$0x1]
      %v1377 = vlaneseq
      %v1378 = vshrl.u32 %v1377, 7
      %v1379 = vsub.s32 0, %v1378
      %v1380 = vrot.slane %v1375, %v1379
      %v1382 = vadd.f32 %v1373, %v1380
      %v1383 = vadd.f32 %v1374, %v1380
      %v1384 = vadd.f32 %v543, %v1382
      %v1385 = vadd.f32 %v544, %v1383
      %v1386 = vld [vmem:[%s8] sm:$0x1]
      %v1387 = vld [vmem:[%s9] sm:$0x1]
      %v1388 = vsel %vm573, %v1384, 0.0
      %1389 = vadd.xlane.f32.xlu0 %v1388
      %v1390 = vpop.xlane.xlu0 %1389
      %v1391 = vsel %vm573, %v1385, 0.0
      %1392 = vadd.xlane.f32.xlu0 %v1391
      %v1393 = vpop.xlane.xlu0 %1392
      %v1394 = vrcp.pop 32.0
      %v1395 = vmul.f32 %v1390, %v1394
      %v1396 = vmul.f32 %v1393, %v1394
      %v1397 = vmul.f32 %v1384, %v1384
      %v1398 = vmul.f32 %v1385, %v1385
      %v1399 = vsel %vm573, %v1397, 0.0
      %1400 = vadd.xlane.f32.xlu0 %v1399
      %v1401 = vpop.xlane.xlu0 %1400
      %v1402 = vsel %vm573, %v1398, 0.0
      %1403 = vadd.xlane.f32.xlu0 %v1402
      %v1404 = vpop.xlane.xlu0 %1403
      %v1405 = vmul.f32 %v1401, %v1394
      %v1406 = vmul.f32 %v1404, %v1394
      %v1407 = vmul.f32 %v1395, %v1395
      %v1408 = vmul.f32 %v1396, %v1396
      %v1409 = vsub.f32 %v1405, %v1407
      %v1410 = vsub.f32 %v1406, %v1408
      %v1411 = vsub.f32 %v1384, %v1395
      %v1412 = vsub.f32 %v1385, %v1396
      %v1413 = vadd.f32 %v1409, 1e-05
      %v1414 = vadd.f32 %v1410, 1e-05
      %v1415 = vrsqrt.pop %v1413
      %v1416 = vrsqrt.pop %v1414
      %v1417 = vmul.f32 %v1411, %v1415
      %v1418 = vmul.f32 %v1412, %v1416
      %v1420 = vlaneseq
      %v1421 = vshrl.u32 %v1420, 7
      %v1422 = vsub.s32 0, %v1421
      %v1423 = vrot.slane %v1386, %v1422
      %v1425 = vmul.f32 %v1417, %v1423
      %v1426 = vmul.f32 %v1418, %v1423
      %v1428 = vlaneseq
      %v1429 = vshrl.u32 %v1428, 7
      %v1430 = vsub.s32 0, %v1429
      %v1431 = vrot.slane %v1387, %v1430
      %v1433 = vadd.f32 %v1425, %v1431
      %v1434 = vadd.f32 %v1426, %v1431
      %v1435 = vpack.c.bf16 %v1434, %v1433
      %v1436 = vld [vmem:[%s10] sm:$0xf]
      %v1437 = vld [vmem:[%s10 + $0x4] sm:$0xf]
      %v1438 = vld [vmem:[%s10 + $0x8] sm:$0xf]
      %v1439 = vld [vmem:[%s10 + $0xc] sm:$0xf]
      %v1440 = vld [vmem:[%s11] sm:$0x1]
      %v1442 = vlaneseq
      %v1443 = vshrl.u32 %v1442, 7
      %v1444 = vsub.s32 0, %v1443
      %v1445 = vrot.slane %v1440, %v1444
      %v1451 = vunpack.c.l.b16 %v1436
      %v1452 = vunpack.c.l.b16 %v1437
      %v1453 = vunpack.c.l.b16 %v1438
      %v1454 = vunpack.c.l.b16 %v1439
      %v1455 = vpack.c.b16 %v1452, %v1451
      %v1456 = vpack.c.b16 %v1454, %v1453
      %v1460 = vsel %vm573, %v1435, 0
      %1462 = vmatprep.subr.bf16.mxu0 0
      %1463 = vmatpush1.bf16.msra.mxu0 0
      %1464 = vmatprep.subr.bf16.mxu0 0
      %1465 = vmatpush1.bf16.msra.mxu0 0
      %1466 = vmatprep.subr.bf16.mxu0 0
      %1467 = vmatpush1.bf16.msra.mxu0 0
      %1468 = vmatprep.subr.bf16.mxu0 0
      %1469 = vmatpush1.bf16.msra.mxu0 0
      %1470 = vmatprep.subr.bf16.mxu0 0
      %1471 = vmatpush1.bf16.msra.mxu0 0
      %1472 = vmatprep.subr.bf16.mxu0 0
      %1473 = vmatpush1.bf16.msra.mxu0 0
      %1474 = vmatprep.subr.bf16.mxu0 0
      %1475 = vmatpush1.bf16.msra.mxu0 %v1456
      %1476 = vmatprep.subr.bf16.mxu0 0
      %1477 = vmatpush1.bf16.msra.mxu0 %v1455
      %1478 = vmatprep.subr.bf16.mxu0 0
      %1479 = vmatpush2.bf16.msra.mxu0 0
      %1480 = vmatprep.subr.bf16.mxu0 0
      %1481 = vmatpush2.bf16.msra.mxu0 0
      %1482 = vmatprep.subr.bf16.mxu0 0
      %1483 = vmatpush2.bf16.msra.mxu0 0
      %1484 = vmatprep.subr.bf16.mxu0 0
      %1485 = vmatpush2.bf16.msra.mxu0 0
      %1486 = vmatprep.subr.bf16.mxu0 0
      %1487 = vmatpush2.bf16.msra.mxu0 0
      %1488 = vmatprep.subr.bf16.mxu0 0
      %1489 = vmatpush2.bf16.msra.mxu0 0
      %1490 = vmatprep.subr.bf16.mxu0 0
      %1491 = vmatpush2.bf16.msra.mxu0 0
      %1492 = vmatprep.subr.bf16.mxu0 0
      %1493 = vmatpush2.bf16.msra.mxu0 0
      %1494 = vmatprep.mubr.bf16.mxu0 0
      %1495 = vmatmul.mubr.bf16.gmra.mxu0 %v1460
      %v1496 = vpop.f32.mrf.mxu0
      %v1497 = vadd.f32 %v1445, %v1496
      %v1498 = vpop.f32.mrf.mxu0
      %v1499 = vpop.f32.mrf.mxu0
      %v1500 = vadd.f32 %v1445, %v1499
      %v1501 = vpop.f32.mrf.mxu0
      %1502 = vdwg.mxu0
      %v1503 = vmax.f32 %v1497, 0.0
      %v1504 = vmax.f32 %v1500, 0.0
      %v1505 = vpack.c.bf16 %v1504, %v1503
      %v1506 = vld [vmem:[%s12] sm:$0xf]
      %v1507 = vld [vmem:[%s12 + $0x4] sm:$0xf]
      %v1508 = vld [vmem:[%s12 + $0x8] sm:$0xf]
      %v1509 = vld [vmem:[%s12 + $0xc] sm:$0xf]
      %v1510 = vld [vmem:[%s12 + $0x10] sm:$0xf]
      %v1511 = vld [vmem:[%s12 + $0x14] sm:$0xf]
      %v1512 = vld [vmem:[%s12 + $0x18] sm:$0xf]
      %v1513 = vld [vmem:[%s12 + $0x1c] sm:$0xf]
      %v1514 = vld [vmem:[%s13] sm:$0x1]
      %v1516 = vlaneseq
      %v1517 = vshrl.u32 %v1516, 7
      %v1518 = vsub.s32 0, %v1517
      %v1519 = vrot.slane %v1514, %v1518
      %v1529 = vunpack.c.l.b16 %v1506
      %v1530 = vunpack.c.l.b16 %v1507
      %v1531 = vunpack.c.l.b16 %v1508
      %v1532 = vunpack.c.l.b16 %v1509
      %v1533 = vunpack.c.l.b16 %v1510
      %v1534 = vunpack.c.l.b16 %v1511
      %v1535 = vunpack.c.l.b16 %v1512
      %v1536 = vunpack.c.l.b16 %v1513
      %v1537 = vpack.c.b16 %v1530, %v1529
      %v1538 = vpack.c.b16 %v1532, %v1531
      %v1539 = vpack.c.b16 %v1534, %v1533
      %v1540 = vpack.c.b16 %v1536, %v1535
      %vm1545 = vcmask 523264
      %v1547 = vsel %vm1545, %v1505, 0
      %1549 = vmatprep.subr.bf16.mxu0 0
      %1550 = vmatpush1.bf16.msra.mxu0 0
      %1551 = vmatprep.subr.bf16.mxu0 0
      %1552 = vmatpush1.bf16.msra.mxu0 0
      %1553 = vmatprep.subr.bf16.mxu0 0
      %1554 = vmatpush1.bf16.msra.mxu0 0
      %1555 = vmatprep.subr.bf16.mxu0 0
      %1556 = vmatpush1.bf16.msra.mxu0 0
      %1557 = vmatprep.subr.bf16.mxu0 0
      %1558 = vmatpush1.bf16.msra.mxu0 %v1540
      %1559 = vmatprep.subr.bf16.mxu0 0
      %1560 = vmatpush1.bf16.msra.mxu0 %v1539
      %1561 = vmatprep.subr.bf16.mxu0 0
      %1562 = vmatpush1.bf16.msra.mxu0 %v1538
      %1563 = vmatprep.subr.bf16.mxu0 0
      %1564 = vmatpush1.bf16.msra.mxu0 %v1537
      %1565 = vmatprep.subr.bf16.mxu0 0
      %1566 = vmatpush2.bf16.msra.mxu0 0
      %1567 = vmatprep.subr.bf16.mxu0 0
      %1568 = vmatpush2.bf16.msra.mxu0 0
      %1569 = vmatprep.subr.bf16.mxu0 0
      %1570 = vmatpush2.bf16.msra.mxu0 0
      %1571 = vmatprep.subr.bf16.mxu0 0
      %1572 = vmatpush2.bf16.msra.mxu0 0
      %1573 = vmatprep.subr.bf16.mxu0 0
      %1574 = vmatpush2.bf16.msra.mxu0 0
      %1575 = vmatprep.subr.bf16.mxu0 0
      %1576 = vmatpush2.bf16.msra.mxu0 0
      %1577 = vmatprep.subr.bf16.mxu0 0
      %1578 = vmatpush2.bf16.msra.mxu0 0
      %1579 = vmatprep.subr.bf16.mxu0 0
      %1580 = vmatpush2.bf16.msra.mxu0 0
      %1581 = vmatprep.mubr.bf16.mxu0 0
      %1582 = vmatmul.mubr.bf16.gmra.mxu0 %v1547
      %v1583 = vpop.f32.mrf.mxu0
      %v1584 = vadd.f32 %v1519, %v1583
      %v1585 = vpop.f32.mrf.mxu0
      %v1586 = vpop.f32.mrf.mxu0
      %v1587 = vadd.f32 %v1519, %v1586
      %v1588 = vpop.f32.mrf.mxu0
      %1589 = vdwg.mxu0
      %v1590 = vadd.f32 %v1433, %v1584
      %v1591 = vadd.f32 %v1434, %v1587
      %v1592 = vld [vmem:[%s14] sm:$0x1]
      %v1593 = vld [vmem:[%s15] sm:$0x1]
      %v1594 = vsel %vm573, %v1590, 0.0
      %1595 = vadd.xlane.f32.xlu0 %v1594
      %v1596 = vpop.xlane.xlu0 %1595
      %v1597 = vsel %vm573, %v1591, 0.0
      %1598 = vadd.xlane.f32.xlu0 %v1597
      %v1599 = vpop.xlane.xlu0 %1598
      %v1600 = vmul.f32 %v1596, %v1394
      %v1601 = vmul.f32 %v1599, %v1394
      %v1602 = vmul.f32 %v1590, %v1590
      %v1603 = vmul.f32 %v1591, %v1591
      %v1604 = vsel %vm573, %v1602, 0.0
      %1605 = vadd.xlane.f32.xlu0 %v1604
      %v1606 = vpop.xlane.xlu0 %1605
      %v1607 = vsel %vm573, %v1603, 0.0
      %1608 = vadd.xlane.f32.xlu0 %v1607
      %v1609 = vpop.xlane.xlu0 %1608
      %v1610 = vmul.f32 %v1606, %v1394
      %v1611 = vmul.f32 %v1609, %v1394
      %v1612 = vmul.f32 %v1600, %v1600
      %v1613 = vmul.f32 %v1601, %v1601
      %v1614 = vsub.f32 %v1610, %v1612
      %v1615 = vsub.f32 %v1611, %v1613
      %v1616 = vsub.f32 %v1590, %v1600
      %v1617 = vsub.f32 %v1591, %v1601
      %v1618 = vadd.f32 %v1614, 1e-05
      %v1619 = vadd.f32 %v1615, 1e-05
      %v1620 = vrsqrt.pop %v1618
      %v1621 = vrsqrt.pop %v1619
      %v1622 = vmul.f32 %v1616, %v1620
      %v1623 = vmul.f32 %v1617, %v1621
      %v1625 = vlaneseq
      %v1626 = vshrl.u32 %v1625, 7
      %v1627 = vsub.s32 0, %v1626
      %v1628 = vrot.slane %v1592, %v1627
      %v1630 = vmul.f32 %v1622, %v1628
      %v1631 = vmul.f32 %v1623, %v1628
      %v1633 = vlaneseq
      %v1634 = vshrl.u32 %v1633, 7
      %v1635 = vsub.s32 0, %v1634
      %v1636 = vrot.slane %v1593, %v1635
      %v1638 = vadd.f32 %v1630, %v1636
      %v1639 = vadd.f32 %v1631, %v1636
      %1640 = vst.msk [vmem:[%s541] sm:$0xff] %vm573, %v1638
      %1641 = vst.msk [vmem:[%s541 + $0x8] sm:$0xff] %vm573, %v1639
      %p1642 = scmp.lt.s32.totalorder %s27, 1
      %s1643 = scalar_select %p1642, %s27, 1
      %s1644 = smul.addr %s1643, 2
      %s1645 = smul.addr %s1644, 8
      %s1646 = scalar_lea.vmem %s16, %s1645
      // Predicated region
      $region85: #{encoder_layer.1} parent=83 // pred_check
        %p1647 = pneg %p391
      $region86: #{encoder_layer.1} parent=83 // pred_check_branch
        %1649 = sbr.rel (%p1647) target = $region88
      $region87: #{encoder_layer.1} parent=83 // pred_region
        _
      $region88: #{encoder_layer.1} parent=83 // pred_fallthru
        _
    $region84: #{encoder_layer.1} parent=5 // pred_fallthru
      _
    %p1650 = scmp.le.s32.totalorder 2, %s22
    // Predicated region
    $region89: #{encoder_layer.1} parent=5 // pred_check
      %p1651 = pneg %p1650
    $region90: #{encoder_layer.1} parent=5 // pred_check_branch
      %1653 = sbr.rel (%p1651) target = $region92
    $region91: #{encoder_layer.1} parent=5 // pred_region
      %s1654 = ssub.s32 %s22, 2
      // Predicated region
      $region93: #{encoder_layer.1} parent=91 // pred_check
        %p1655 = pneg %p397
      $region94: #{encoder_layer.1} parent=91 // pred_check_branch
        %1657 = sbr.rel (%p1655) target = $region96
      $region95: #{encoder_layer.1} parent=91 // pred_region
        %p1658 = scmp.lt.s32.totalorder %s28, 1
        %s1659 = scalar_select %p1658, %s28, 1
        %s1660 = smul.addr %s1659, 2
        %s1661 = smul.addr %s1660, 8
        %s1662 = scalar_lea.vmem %s16, %s1661
      $region96: #{encoder_layer.1} parent=91 // pred_fallthru
        _
    $region92: #{encoder_layer.1} parent=5 // pred_fallthru
      _
  $region6: #{encoder_layer.1} parent=0 // loop_footer
    %s26 = sadd.s32 1, %s22
  $region7: #{encoder_layer.1} parent=0 // loop_footer_branch
    %21 = sbr.rel target = $region3
  $region8: #{encoder_layer.1} parent=0 // loop_exit
    _

</llo_original>
